<compile_context>
chip_gen: v7x
topology: tpu7x:2x2x1
jax: 0.10.0
libtpu: 0.0.40
codegen_flags: <defaults>
</compile_context>

<pallas_src>
import functools

import jax
import jax.numpy as jnp
from jax.experimental import pallas as pl
from jax.experimental.pallas import tpu as pltpu

_LN_EPS = 1e-5
_NEG_INF = -1e30  # large finite negative: equivalent to -inf here, avoids inf-inf NaN traps.


def _layer_norm(h, gamma, beta):
    mu = jnp.mean(h, axis=-1, keepdims=True)
    d = h - mu
    var = jnp.mean(d * d, axis=-1, keepdims=True)
    return d * jax.lax.rsqrt(var + _LN_EPS) * gamma + beta


def _bigram_lm_kernel(idx_ref, pos_ref, slab_ref, out_ref, *,
                      B, T, C, n_heads, vocab_pad,
                      r_tok, r_wqkv, r_wf1, r_wf2, r_wlm, r_vec):
    f32 = jnp.float32
    BT = B * T
    H = C // n_heads
    F = 4 * C

    # ---- static views into the single consolidated parameter slab (no extra DMAs) ----
    w_tok = slab_ref[r_tok:r_tok + vocab_pad, :]          # (Vp, LANE) zero-padded token table
    w_qkv = slab_ref[r_wqkv:r_wqkv + C, :]                # (C, LANE); cols [0,3C) = q|k|v (head-major)
    w_f1 = slab_ref[r_wf1:r_wf1 + C, :]                   # (C, LANE); cols [0,4C) valid
    w_f2 = slab_ref[r_wf2:r_wf2 + F, :]                   # (4C, LANE); cols [0,C) valid
    w_lm = slab_ref[r_wlm:r_wlm + C, :]                   # (C, LANE); cols [0,V) valid
    g1 = slab_ref[r_vec + 0:r_vec + 1, :C]
    b1 = slab_ref[r_vec + 1:r_vec + 2, :C]
    g2 = slab_ref[r_vec + 2:r_vec + 3, :C]
    b2 = slab_ref[r_vec + 3:r_vec + 4, :C]
    b_f1 = slab_ref[r_vec + 4:r_vec + 5, :F]
    b_f2 = slab_ref[r_vec + 5:r_vec + 6, :C]
    b_lm = slab_ref[r_vec + 6:r_vec + 7, :]               # (1, LANE); padded lanes are zero

    # ---- embeddings: exact gather via a lane-dense one-hot matmul (MXU-friendly) ----
    onehot = (jax.lax.broadcasted_iota(jnp.int32, (BT, vocab_pad), 1)
              == idx_ref[...]).astype(f32)                # (BT, Vp)
    tok = jnp.dot(onehot, w_tok, preferred_element_type=f32)   # (BT, LANE)
    x = tok[:, :C] + pos_ref[...]                         # (BT, C) residual stream

    # ---- Block: LN1 -> multi-head causal self-attention -> residual ----
    h = _layer_norm(x, g1, b1)
    qkv = jnp.dot(h, w_qkv, preferred_element_type=f32)   # (BT, LANE); one matmul for all heads

    def stack_heads(base):
        # (BT, H) per head -> (n_heads * B, T, H), heads stacked along the batch axis.
        return jnp.concatenate(
            [qkv[:, base + hd * H: base + (hd + 1) * H].reshape(B, T, H)
             for hd in range(n_heads)], axis=0)

    q = stack_heads(0)
    k = stack_heads(C)
    v = stack_heads(2 * C)

    scale = C ** (-0.5)  # NOTE: module scales by n_embed (=C), not head_size, per the PyTorch spec.
    # q @ k^T with the transpose folded into the contraction dims; all heads in one batched MXU call.
    wei = jnp.einsum('xtd,xsd->xts', q, k,
                     preferred_element_type=f32) * scale  # (n_heads*B, T, T)
    row = jax.lax.broadcasted_iota(jnp.int32, (T, T), 0)
    col = jax.lax.broadcasted_iota(jnp.int32, (T, T), 1)
    wei = jnp.where((col > row)[None], _NEG_INF, wei)
    wei = wei - jnp.max(wei, axis=-1, keepdims=True)
    p = jnp.exp(wei)
    p = p / jnp.sum(p, axis=-1, keepdims=True)            # exact softmax (fp32, matches torch tightly)
    att = jnp.einsum('xts,xsd->xtd', p, v,
                     preferred_element_type=f32)          # (n_heads*B, T, H)
    # torch.cat over heads along the feature dim, back in the flat (BT, C) layout — stays in vregs.
    att = jnp.concatenate([att[hd * B:(hd + 1) * B].reshape(BT, H)
                           for hd in range(n_heads)], axis=-1)
    x = x + att                                           # residual 1

    # ---- Block: LN2 -> FFN (Linear -> ReLU -> Linear) -> residual ----
    h2 = _layer_norm(x, g2, b2)
    f = jnp.dot(h2, w_f1, preferred_element_type=f32)[:, :F] + b_f1
    f = jnp.maximum(f, 0.0)
    x = x + (jnp.dot(f, w_f2, preferred_element_type=f32)[:, :C] + b_f2)  # residual 2

    # ---- lm_head: lane-dense (BT, LANE) padded-vocab logits, single unmasked store ----
    out_ref[...] = jnp.dot(x, w_lm, preferred_element_type=f32) + b_lm


def bigram_lm_forward(idx, params, targets=None):
    """Full BigramLanguageModel forward. Returns (logits, loss) like the PyTorch module."""
    idx = idx.astype(jnp.int32)
    B, T = idx.shape
    V, C = params['tok_tab'].shape
    n_heads = len(params['wq'])
    F = 4 * C
    BT = B * T

    vocab_pad = ((V + 127) // 128) * 128
    lane = ((max(128, vocab_pad, 3 * C, F) + 127) // 128) * 128

    def pad2(a, rows):
        a = a.astype(jnp.float32)
        r, c = a.shape
        return jnp.pad(a, ((0, rows - r), (0, lane - c)))

    def pad1(a):
        a = a.astype(jnp.float32)
        return jnp.pad(a, (0, lane - a.shape[0]))

    # Fused, pre-transposed (in, out) QKV weight: columns = [q_h0..q_h3 | k_h0.. | v_h0..].
    wqkv = jnp.concatenate(
        [jnp.concatenate([w.T for w in params[name]], axis=1)
         for name in ('wq', 'wk', 'wv')], axis=1)                      # (C, 3C)

    # ONE consolidated fp32 slab: token table + all weight matrices + all LN/bias vectors.
    vec_rows = jnp.stack([
        pad1(params['g1']), pad1(params['be1']),
        pad1(params['g2']), pad1(params['be2']),
        pad1(params['b1']), pad1(params['b2']), pad1(params['blm']),
        jnp.zeros((lane,), jnp.float32),
    ])                                                                 # (8, lane)
    blocks = [
        ('tok', pad2(params['tok_tab'], vocab_pad)),
        ('wqkv', pad2(wqkv, C)),
        ('wf1', pad2(params['w1'].T, C)),
        ('wf2', pad2(params['w2'].T, F)),
        ('wlm', pad2(params['wlm'].T, C)),
        ('vec', vec_rows),
    ]
    offs, r = {}, 0
    for name, blk in blocks:
        offs[name] = r
        r += blk.shape[0]
    slab = jnp.concatenate([blk for _, blk in blocks], axis=0)         # (rows, lane)

    # Pre-tiled position embedding and pre-flattened idx column: kernel stays in (BT, lane) layout.
    pos_tiled = jnp.tile(params['pos_tab'][:T].astype(jnp.float32), (B, 1))   # (BT, C)
    idx_col = idx.reshape(BT, 1)

    vmem = lambda: pl.BlockSpec(memory_space=pltpu.MemorySpace.VMEM)
    logits_pad = pl.pallas_call(
        functools.partial(
            _bigram_lm_kernel, B=B, T=T, C=C, n_heads=n_heads, vocab_pad=vocab_pad,
            r_tok=offs['tok'], r_wqkv=offs['wqkv'], r_wf1=offs['wf1'],
            r_wf2=offs['wf2'], r_wlm=offs['wlm'], r_vec=offs['vec']),
        out_shape=jax.ShapeDtypeStruct((BT, lane), jnp.float32),
        in_specs=[vmem(), vmem(), vmem()],
        out_specs=vmem(),
    )(idx_col, pos_tiled, slab)

    logits = logits_pad[:, :V].reshape(B, T, V)
    if targets is None:
        return logits, None
    # F.cross_entropy (mean over B*T) — plain-JAX post-processing outside the kernel.
    logp = jax.nn.log_softmax(logits_pad[:, :V], axis=-1)
    loss = -jnp.mean(jnp.take_along_axis(
        logp, targets.reshape(BT, 1).astype(jnp.int32), axis=-1))
    return logits, loss


# ----------------------------- pure-JAX reference (mirrors PyTorch) -----------------------------

def _reference_forward(idx, params):
    B, T = idx.shape
    tok = params['tok_tab'][idx]
    pos = params['pos_tab'][:T]
    x = tok + pos[None]
    C = x.shape[-1]

    def ln(h, g, b):
        mu = jnp.mean(h, axis=-1, keepdims=True)
        var = jnp.mean((h - mu) ** 2, axis=-1, keepdims=True)
        return (h - mu) / jnp.sqrt(var + _LN_EPS) * g + b

    h = ln(x, params['g1'], params['be1'])
    mask = jnp.tril(jnp.ones((T, T), dtype=bool))
    outs = []
    for wq, wk, wv in zip(params['wq'], params['wk'], params['wv']):
        q = h @ wq.T
        k = h @ wk.T
        v = h @ wv.T
        wei = (q @ jnp.swapaxes(k, -2, -1)) * (C ** -0.5)
        wei = jnp.where(mask, wei, -jnp.inf)
        wei = jax.nn.softmax(wei, axis=-1)
        outs.append(wei @ v)
    x = x + jnp.concatenate(outs, axis=-1)

    h2 = ln(x, params['g2'], params['be2'])
    f = jnp.maximum(h2 @ params['w1'].T + params['b1'], 0.0)
    x = x + f @ params['w2'].T + params['b2']
    return x @ params['wlm'].T + params['blm']


def _init_params(key, vocab_size, n_embed, block_size, n_heads):
    head_size = n_embed // n_heads
    hidden = 4 * n_embed
    keys = iter(jax.random.split(key, 32))

    def lin_w(out_f, in_f):
        b = 1.0 / (in_f ** 0.5)
        return jax.random.uniform(next(keys), (out_f, in_f), jnp.float32, -b, b)

    def lin_b(out_f, in_f):
        b = 1.0 / (in_f ** 0.5)
        return jax.random.uniform(next(keys), (out_f,), jnp.float32, -b, b)

    return {
        'tok_tab': jax.random.normal(next(keys), (vocab_size, n_embed), jnp.float32),
        'pos_tab': jax.random.normal(next(keys), (block_size, n_embed), jnp.float32),
        'g1': 1.0 + 0.1 * jax.random.normal(next(keys), (n_embed,), jnp.float32),
        'be1': 0.1 * jax.random.normal(next(keys), (n_embed,), jnp.float32),
        'g2': 1.0 + 0.1 * jax.random.normal(next(keys), (n_embed,), jnp.float32),
        'be2': 0.1 * jax.random.normal(next(keys), (n_embed,), jnp.float32),
        'wq': [lin_w(head_size, n_embed) for _ in range(n_heads)],
        'wk': [lin_w(head_size, n_embed) for _ in range(n_heads)],
        'wv': [lin_w(head_size, n_embed) for _ in range(n_heads)],
        'w1': lin_w(hidden, n_embed), 'b1': lin_b(hidden, n_embed),
        'w2': lin_w(n_embed, hidden), 'b2': lin_b(n_embed, hidden),
        'wlm': lin_w(vocab_size, n_embed), 'blm': lin_b(vocab_size, n_embed),
    }


if __name__ == "__main__":
    # Small shapes consistent with the module: vocab=65, n_embed=32, block_size=8, 4 heads of size 8.
    VOCAB, N_EMBED, BLOCK_SIZE, N_HEADS = 65, 32, 8, 4
    B, T = 2, BLOCK_SIZE

    root = jax.random.PRNGKey(0)
    k_param, k_idx, k_tgt = jax.random.split(root, 3)
    params = _init_params(k_param, VOCAB, N_EMBED, BLOCK_SIZE, N_HEADS)
    idx = jax.random.randint(k_idx, (B, T), 0, VOCAB, dtype=jnp.int32)
    targets = jax.random.randint(k_tgt, (B, T), 0, VOCAB, dtype=jnp.int32)

    logits, loss = bigram_lm_forward(idx, params, targets)
    logits = jax.block_until_ready(logits)

    ref = _reference_forward(idx, params)
    assert logits.shape == (B, T, VOCAB), logits.shape
    # Everything is fp32 with fp32 MXU accumulation and an exact softmax -> tight tolerance.
    assert jnp.allclose(logits, ref, atol=2e-3, rtol=2e-3), \
        float(jnp.max(jnp.abs(logits - ref)))
    assert bool(jnp.isfinite(loss)), loss

    print("KERNEL_OK")
</pallas_src>

<mosaic_0001>
module attributes {stable_mosaic.version = 11 : i64} {
  func.func @_bigram_lm_kernel(%arg0: memref<16x1xi32, #tpu.memory_space<vmem>>, %arg1: memref<16x32xf32, #tpu.memory_space<vmem>>, %arg2: memref<360x128xf32, #tpu.memory_space<vmem>>, %arg3: memref<16x128xf32, #tpu.memory_space<vmem>>) attributes {dimension_semantics = [], scalar_prefetch = 0 : i64, scratch_operands = 0 : i64, tpu.core_type = #tpu.core_type<tc>} {
    %c0 = arith.constant 0 : index
    %c0_0 = arith.constant 0 : index
    %0 = vector.load %arg2[%c0, %c0_0] : memref<360x128xf32, #tpu.memory_space<vmem>>, vector<128x128xf32>
    %c128 = arith.constant 128 : index
    %c0_1 = arith.constant 0 : index
    %1 = vector.load %arg2[%c128, %c0_1] : memref<360x128xf32, #tpu.memory_space<vmem>>, vector<32x128xf32>
    %c160 = arith.constant 160 : index
    %c0_2 = arith.constant 0 : index
    %2 = vector.load %arg2[%c160, %c0_2] : memref<360x128xf32, #tpu.memory_space<vmem>>, vector<32x128xf32>
    %c192 = arith.constant 192 : index
    %c0_3 = arith.constant 0 : index
    %3 = vector.load %arg2[%c192, %c0_3] : memref<360x128xf32, #tpu.memory_space<vmem>>, vector<128x128xf32>
    %c320 = arith.constant 320 : index
    %c0_4 = arith.constant 0 : index
    %4 = vector.load %arg2[%c320, %c0_4] : memref<360x128xf32, #tpu.memory_space<vmem>>, vector<32x128xf32>
    %c352 = arith.constant 352 : index
    %c0_5 = arith.constant 0 : index
    %5 = vector.load %arg2[%c352, %c0_5] : memref<360x128xf32, #tpu.memory_space<vmem>>, vector<1x32xf32>
    %c353 = arith.constant 353 : index
    %c0_6 = arith.constant 0 : index
    %6 = vector.load %arg2[%c353, %c0_6] : memref<360x128xf32, #tpu.memory_space<vmem>>, vector<1x32xf32>
    %c354 = arith.constant 354 : index
    %c0_7 = arith.constant 0 : index
    %7 = vector.load %arg2[%c354, %c0_7] : memref<360x128xf32, #tpu.memory_space<vmem>>, vector<1x32xf32>
    %c355 = arith.constant 355 : index
    %c0_8 = arith.constant 0 : index
    %8 = vector.load %arg2[%c355, %c0_8] : memref<360x128xf32, #tpu.memory_space<vmem>>, vector<1x32xf32>
    %c356 = arith.constant 356 : index
    %c0_9 = arith.constant 0 : index
    %9 = vector.load %arg2[%c356, %c0_9] : memref<360x128xf32, #tpu.memory_space<vmem>>, vector<1x128xf32>
    %c357 = arith.constant 357 : index
    %c0_10 = arith.constant 0 : index
    %10 = vector.load %arg2[%c357, %c0_10] : memref<360x128xf32, #tpu.memory_space<vmem>>, vector<1x32xf32>
    %c358 = arith.constant 358 : index
    %c0_11 = arith.constant 0 : index
    %11 = vector.load %arg2[%c358, %c0_11] : memref<360x128xf32, #tpu.memory_space<vmem>>, vector<1x128xf32>
    %12 = tpu.iota {dimensions = array<i32: 1>} : vector<16x128xi32>
    %c0_12 = arith.constant 0 : index
    %c0_13 = arith.constant 0 : index
    %13 = vector.load %arg0[%c0_12, %c0_13] : memref<16x1xi32, #tpu.memory_space<vmem>>, vector<16x1xi32>
    %14 = vector.broadcast %13 : vector<16x1xi32> to vector<16x128xi32>
    %15 = arith.cmpi eq, %12, %14 : vector<16x128xi32>
    %16 = arith.extui %15 : vector<16x128xi1> to vector<16x128xi32>
    %17 = arith.sitofp %16 : vector<16x128xi32> to vector<16x128xf32>
    %cst = arith.constant dense<0.000000e+00> : vector<16x128xf32>
    %18 = tpu.matmul %17, %0, %cst {dimension_numbers = #tpu.dot_dimension_numbers<[1], [0], [0], [1], [0, 0, 1, 1], [], []>} : vector<16x128xf32>, vector<128x128xf32>, vector<16x128xf32> -> vector<16x128xf32>
    %19 = vector.extract_strided_slice %18 {offsets = [0, 0], sizes = [16, 32], strides = [1, 1]} : vector<16x128xf32> to vector<16x32xf32>
    %c0_14 = arith.constant 0 : index
    %c0_15 = arith.constant 0 : index
    %20 = vector.load %arg1[%c0_14, %c0_15] : memref<16x32xf32, #tpu.memory_space<vmem>>, vector<16x32xf32>
    %21 = arith.addf %19, %20 : vector<16x32xf32>
    %cst_16 = arith.constant dense<0.000000e+00> : vector<16xf32>
    %22 = vector.multi_reduction <add>, %21, %cst_16 [1] : vector<16x32xf32> to vector<16xf32>
    %23 = vector.shape_cast %22 : vector<16xf32> to vector<16x1xf32>
    %cst_17 = arith.constant 3.200000e+01 : f32
    %24 = vector.broadcast %cst_17 : f32 to vector<16x1xf32>
    %25 = arith.divf %23, %24 : vector<16x1xf32>
    %26 = vector.broadcast %25 : vector<16x1xf32> to vector<16x32xf32>
    %27 = arith.subf %21, %26 : vector<16x32xf32>
    %28 = arith.mulf %27, %27 : vector<16x32xf32>
    %cst_18 = arith.constant dense<0.000000e+00> : vector<16xf32>
    %29 = vector.multi_reduction <add>, %28, %cst_18 [1] : vector<16x32xf32> to vector<16xf32>
    %30 = vector.shape_cast %29 : vector<16xf32> to vector<16x1xf32>
    %cst_19 = arith.constant 3.200000e+01 : f32
    %31 = vector.broadcast %cst_19 : f32 to vector<16x1xf32>
    %32 = arith.divf %30, %31 : vector<16x1xf32>
    %cst_20 = arith.constant 9.99999974E-6 : f32
    %33 = vector.broadcast %cst_20 : f32 to vector<16x1xf32>
    %34 = arith.addf %32, %33 : vector<16x1xf32>
    %35 = math.rsqrt %34 : vector<16x1xf32>
    %36 = vector.broadcast %35 : vector<16x1xf32> to vector<16x32xf32>
    %37 = arith.mulf %27, %36 : vector<16x32xf32>
    %38 = vector.broadcast %5 : vector<1x32xf32> to vector<16x32xf32>
    %39 = arith.mulf %37, %38 : vector<16x32xf32>
    %40 = vector.broadcast %6 : vector<1x32xf32> to vector<16x32xf32>
    %41 = arith.addf %39, %40 : vector<16x32xf32>
    %cst_21 = arith.constant dense<0.000000e+00> : vector<16x128xf32>
    %42 = tpu.matmul %41, %1, %cst_21 {dimension_numbers = #tpu.dot_dimension_numbers<[1], [0], [0], [1], [0, 0, 1, 1], [], []>} : vector<16x32xf32>, vector<32x128xf32>, vector<16x128xf32> -> vector<16x128xf32>
    %43 = vector.extract_strided_slice %42 {offsets = [0, 0], sizes = [16, 8], strides = [1, 1]} : vector<16x128xf32> to vector<16x8xf32>
    %44 = vector.shape_cast %43 : vector<16x8xf32> to vector<2x8x8xf32>
    %45 = vector.extract_strided_slice %42 {offsets = [0, 8], sizes = [16, 8], strides = [1, 1]} : vector<16x128xf32> to vector<16x8xf32>
    %46 = vector.shape_cast %45 : vector<16x8xf32> to vector<2x8x8xf32>
    %47 = vector.extract_strided_slice %42 {offsets = [0, 16], sizes = [16, 8], strides = [1, 1]} : vector<16x128xf32> to vector<16x8xf32>
    %48 = vector.shape_cast %47 : vector<16x8xf32> to vector<2x8x8xf32>
    %49 = vector.extract_strided_slice %42 {offsets = [0, 24], sizes = [16, 8], strides = [1, 1]} : vector<16x128xf32> to vector<16x8xf32>
    %50 = vector.shape_cast %49 : vector<16x8xf32> to vector<2x8x8xf32>
    %51 = tpu.concatenate %44, %46, %48, %50 in 0 : vector<2x8x8xf32>, vector<2x8x8xf32>, vector<2x8x8xf32>, vector<2x8x8xf32> -> vector<8x8x8xf32>
    %52 = vector.extract_strided_slice %42 {offsets = [0, 32], sizes = [16, 8], strides = [1, 1]} : vector<16x128xf32> to vector<16x8xf32>
    %53 = vector.shape_cast %52 : vector<16x8xf32> to vector<2x8x8xf32>
    %54 = vector.extract_strided_slice %42 {offsets = [0, 40], sizes = [16, 8], strides = [1, 1]} : vector<16x128xf32> to vector<16x8xf32>
    %55 = vector.shape_cast %54 : vector<16x8xf32> to vector<2x8x8xf32>
    %56 = vector.extract_strided_slice %42 {offsets = [0, 48], sizes = [16, 8], strides = [1, 1]} : vector<16x128xf32> to vector<16x8xf32>
    %57 = vector.shape_cast %56 : vector<16x8xf32> to vector<2x8x8xf32>
    %58 = vector.extract_strided_slice %42 {offsets = [0, 56], sizes = [16, 8], strides = [1, 1]} : vector<16x128xf32> to vector<16x8xf32>
    %59 = vector.shape_cast %58 : vector<16x8xf32> to vector<2x8x8xf32>
    %60 = tpu.concatenate %53, %55, %57, %59 in 0 : vector<2x8x8xf32>, vector<2x8x8xf32>, vector<2x8x8xf32>, vector<2x8x8xf32> -> vector<8x8x8xf32>
    %61 = vector.extract_strided_slice %42 {offsets = [0, 64], sizes = [16, 8], strides = [1, 1]} : vector<16x128xf32> to vector<16x8xf32>
    %62 = vector.shape_cast %61 : vector<16x8xf32> to vector<2x8x8xf32>
    %63 = vector.extract_strided_slice %42 {offsets = [0, 72], sizes = [16, 8], strides = [1, 1]} : vector<16x128xf32> to vector<16x8xf32>
    %64 = vector.shape_cast %63 : vector<16x8xf32> to vector<2x8x8xf32>
    %65 = vector.extract_strided_slice %42 {offsets = [0, 80], sizes = [16, 8], strides = [1, 1]} : vector<16x128xf32> to vector<16x8xf32>
    %66 = vector.shape_cast %65 : vector<16x8xf32> to vector<2x8x8xf32>
    %67 = vector.extract_strided_slice %42 {offsets = [0, 88], sizes = [16, 8], strides = [1, 1]} : vector<16x128xf32> to vector<16x8xf32>
    %68 = vector.shape_cast %67 : vector<16x8xf32> to vector<2x8x8xf32>
    %69 = tpu.concatenate %62, %64, %66, %68 in 0 : vector<2x8x8xf32>, vector<2x8x8xf32>, vector<2x8x8xf32>, vector<2x8x8xf32> -> vector<8x8x8xf32>
    "tpu.trace_start"() <{level = 10 : i32, message = "xtd,xsd->xts"}> : () -> ()
    %cst_22 = arith.constant dense<0.000000e+00> : vector<8x8x8xf32>
    %70 = tpu.matmul %51, %60, %cst_22 {dimension_numbers = #tpu.dot_dimension_numbers<[2], [2], [1], [1], [0, 0, 0, 1, 1, 1], [0], [0]>} : vector<8x8x8xf32>, vector<8x8x8xf32>, vector<8x8x8xf32> -> vector<8x8x8xf32>
    "tpu.trace_stop"() : () -> ()
    %cst_23 = arith.constant 0.176776692 : f32
    %71 = vector.broadcast %cst_23 : f32 to vector<8x8x8xf32>
    %72 = arith.mulf %70, %71 : vector<8x8x8xf32>
    %73 = tpu.iota {dimensions = array<i32: 0>} : vector<8x8xi32>
    %74 = tpu.iota {dimensions = array<i32: 1>} : vector<8x8xi32>
    %75 = arith.cmpi sgt, %74, %73 : vector<8x8xi32>
    %76 = vector.shape_cast %75 : vector<8x8xi1> to vector<1x8x8xi1>
    %cst_24 = arith.constant -1.000000e+30 : f32
    %77 = vector.shape_cast %76 : vector<1x8x8xi1> to vector<1x8x8xi1>
    %78 = vector.broadcast %77 : vector<1x8x8xi1> to vector<8x8x8xi1>
    %79 = vector.broadcast %cst_24 : f32 to vector<8x8x8xf32>
    %80 = arith.select %78, %79, %72 : vector<8x8x8xi1>, vector<8x8x8xf32>
    %cst_25 = arith.constant dense<0xFF800000> : vector<8x8xf32>
    %81 = vector.multi_reduction <maximumf>, %80, %cst_25 [2] : vector<8x8x8xf32> to vector<8x8xf32>
    %82 = vector.shape_cast %81 : vector<8x8xf32> to vector<8x8x1xf32>
    %83 = vector.broadcast %82 : vector<8x8x1xf32> to vector<8x8x8xf32>
    %84 = arith.subf %80, %83 : vector<8x8x8xf32>
    %85 = math.exp %84 : vector<8x8x8xf32>
    %cst_26 = arith.constant dense<0.000000e+00> : vector<8x8xf32>
    %86 = vector.multi_reduction <add>, %85, %cst_26 [2] : vector<8x8x8xf32> to vector<8x8xf32>
    %87 = vector.shape_cast %86 : vector<8x8xf32> to vector<8x8x1xf32>
    %88 = vector.broadcast %87 : vector<8x8x1xf32> to vector<8x8x8xf32>
    %89 = arith.divf %85, %88 : vector<8x8x8xf32>
    "tpu.trace_start"() <{level = 10 : i32, message = "xts,xsd->xtd"}> : () -> ()
    %cst_27 = arith.constant dense<0.000000e+00> : vector<8x8x8xf32>
    %90 = tpu.matmul %89, %69, %cst_27 {dimension_numbers = #tpu.dot_dimension_numbers<[2], [1], [1], [2], [0, 0, 0, 1, 1, 2], [0], [0]>} : vector<8x8x8xf32>, vector<8x8x8xf32>, vector<8x8x8xf32> -> vector<8x8x8xf32>
    "tpu.trace_stop"() : () -> ()
    %91 = vector.extract_strided_slice %90 {offsets = [0, 0, 0], sizes = [2, 8, 8], strides = [1, 1, 1]} : vector<8x8x8xf32> to vector<2x8x8xf32>
    %92 = vector.shape_cast %91 : vector<2x8x8xf32> to vector<16x8xf32>
    %93 = vector.extract_strided_slice %90 {offsets = [2, 0, 0], sizes = [2, 8, 8], strides = [1, 1, 1]} : vector<8x8x8xf32> to vector<2x8x8xf32>
    %94 = vector.shape_cast %93 : vector<2x8x8xf32> to vector<16x8xf32>
    %95 = vector.extract_strided_slice %90 {offsets = [4, 0, 0], sizes = [2, 8, 8], strides = [1, 1, 1]} : vector<8x8x8xf32> to vector<2x8x8xf32>
    %96 = vector.shape_cast %95 : vector<2x8x8xf32> to vector<16x8xf32>
    %97 = vector.extract_strided_slice %90 {offsets = [6, 0, 0], sizes = [2, 8, 8], strides = [1, 1, 1]} : vector<8x8x8xf32> to vector<2x8x8xf32>
    %98 = vector.shape_cast %97 : vector<2x8x8xf32> to vector<16x8xf32>
    %99 = tpu.concatenate %92, %94, %96, %98 in 1 : vector<16x8xf32>, vector<16x8xf32>, vector<16x8xf32>, vector<16x8xf32> -> vector<16x32xf32>
    %100 = arith.addf %21, %99 : vector<16x32xf32>
    %cst_28 = arith.constant dense<0.000000e+00> : vector<16xf32>
    %101 = vector.multi_reduction <add>, %100, %cst_28 [1] : vector<16x32xf32> to vector<16xf32>
    %102 = vector.shape_cast %101 : vector<16xf32> to vector<16x1xf32>
    %cst_29 = arith.constant 3.200000e+01 : f32
    %103 = vector.broadcast %cst_29 : f32 to vector<16x1xf32>
    %104 = arith.divf %102, %103 : vector<16x1xf32>
    %105 = vector.broadcast %104 : vector<16x1xf32> to vector<16x32xf32>
    %106 = arith.subf %100, %105 : vector<16x32xf32>
    %107 = arith.mulf %106, %106 : vector<16x32xf32>
    %cst_30 = arith.constant dense<0.000000e+00> : vector<16xf32>
    %108 = vector.multi_reduction <add>, %107, %cst_30 [1] : vector<16x32xf32> to vector<16xf32>
    %109 = vector.shape_cast %108 : vector<16xf32> to vector<16x1xf32>
    %cst_31 = arith.constant 3.200000e+01 : f32
    %110 = vector.broadcast %cst_31 : f32 to vector<16x1xf32>
    %111 = arith.divf %109, %110 : vector<16x1xf32>
    %cst_32 = arith.constant 9.99999974E-6 : f32
    %112 = vector.broadcast %cst_32 : f32 to vector<16x1xf32>
    %113 = arith.addf %111, %112 : vector<16x1xf32>
    %114 = math.rsqrt %113 : vector<16x1xf32>
    %115 = vector.broadcast %114 : vector<16x1xf32> to vector<16x32xf32>
    %116 = arith.mulf %106, %115 : vector<16x32xf32>
    %117 = vector.broadcast %7 : vector<1x32xf32> to vector<16x32xf32>
    %118 = arith.mulf %116, %117 : vector<16x32xf32>
    %119 = vector.broadcast %8 : vector<1x32xf32> to vector<16x32xf32>
    %120 = arith.addf %118, %119 : vector<16x32xf32>
    %cst_33 = arith.constant dense<0.000000e+00> : vector<16x128xf32>
    %121 = tpu.matmul %120, %2, %cst_33 {dimension_numbers = #tpu.dot_dimension_numbers<[1], [0], [0], [1], [0, 0, 1, 1], [], []>} : vector<16x32xf32>, vector<32x128xf32>, vector<16x128xf32> -> vector<16x128xf32>
    %122 = vector.broadcast %9 : vector<1x128xf32> to vector<16x128xf32>
    %123 = arith.addf %121, %122 : vector<16x128xf32>
    %cst_34 = arith.constant 0.000000e+00 : f32
    %124 = vector.broadcast %cst_34 : f32 to vector<16x128xf32>
    %125 = arith.maximumf %123, %124 : vector<16x128xf32>
    %cst_35 = arith.constant dense<0.000000e+00> : vector<16x128xf32>
    %126 = tpu.matmul %125, %3, %cst_35 {dimension_numbers = #tpu.dot_dimension_numbers<[1], [0], [0], [1], [0, 0, 1, 1], [], []>} : vector<16x128xf32>, vector<128x128xf32>, vector<16x128xf32> -> vector<16x128xf32>
    %127 = vector.extract_strided_slice %126 {offsets = [0, 0], sizes = [16, 32], strides = [1, 1]} : vector<16x128xf32> to vector<16x32xf32>
    %128 = vector.broadcast %10 : vector<1x32xf32> to vector<16x32xf32>
    %129 = arith.addf %127, %128 : vector<16x32xf32>
    %130 = arith.addf %100, %129 : vector<16x32xf32>
    %cst_36 = arith.constant dense<0.000000e+00> : vector<16x128xf32>
    %131 = tpu.matmul %130, %4, %cst_36 {dimension_numbers = #tpu.dot_dimension_numbers<[1], [0], [0], [1], [0, 0, 1, 1], [], []>} : vector<16x32xf32>, vector<32x128xf32>, vector<16x128xf32> -> vector<16x128xf32>
    %132 = vector.broadcast %11 : vector<1x128xf32> to vector<16x128xf32>
    %133 = arith.addf %131, %132 : vector<16x128xf32>
    %c0_37 = arith.constant 0 : index
    %c0_38 = arith.constant 0 : index
    %134 = vector.load %arg3[%c0_37, %c0_38] : memref<16x128xf32, #tpu.memory_space<vmem>>, vector<16x128xf32>
    tpu.vector_store %arg3[%c0_37, %c0_38], %133 {strides = array<i32>} : memref<16x128xf32, #tpu.memory_space<vmem>>, vector<16x128xf32>,
    return
  }
}

</mosaic_0001>

<llo_original>
// kernel: tpu_custom_call.1
$region0: #{tpu_custom_call.1}
  #allocation0 [shape = 'u32[]', space=smem, size = 0x4, offset = 0x4, fixed_abs, tag = 'smem constant byte address 0x4 - core index']
  #allocation1 [shape = 'u32[144,128]{1,0:T(1,128)}', space=vmem, size = 0x12000, scoped, tag = 'internal scratch']
  %s0 = inlined_call_operand.vmem [shape: s32[16,1], index: 0, kind: input, shape index: {}]
  %s1 = inlined_call_operand.vmem [shape: f32[16,32], index: 1, kind: input, shape index: {}]
  %s2 = inlined_call_operand.hbm [shape: f32[360,128], index: 2, kind: input, shape index: {}]
  %s3 = inlined_call_operand.hbm [shape: f32[16,128], index: 3, kind: output, shape index: {}]
  %s4 = sld [smem:[#allocation0]]
  $region26: #{tpu_custom_call.1} parent=0
    _
  %s6 = ssub.s32 1, %s4
  %s7 = scalar_select 0, %s6, %s4
  $region1: #{tpu_custom_call.1} parent=0
    #allocation2 [shape = 'u8[184320]{0}', space=vmem, size = 0x2d000, scoped, tag = 'input window, operand 2, single buffered']
    #allocation3 [shape = 's32[1]{0}', space=sflag, size = 0x4, scoped, tag = 'scoped memory for tpu_custom_call.1']
    #allocation4 [shape = 's32[1]{0}', space=sflag, size = 0x4, scoped, tag = 'scoped memory for tpu_custom_call.1']
    #allocation5 [shape = 'u8[8192]{0}', space=vmem, size = 0x2000, scoped, tag = 'output window, operand 0, single buffered']
    %8 = vsyncpa [#allocation3], 0
    %9 = vsyncpa [#allocation4], 0
    // Predicated region
    $region2: #{tpu_custom_call.1} parent=1 // pred_check
      _
    $region3: #{tpu_custom_call.1} parent=1 // pred_check_branch
      %11 = sbr.rel (0) target = $region5
    $region4: #{tpu_custom_call.1} parent=1 // pred_region
      _
    $region5: #{tpu_custom_call.1} parent=1 // pred_fallthru
      _
    // Predicated region
    $region6: #{tpu_custom_call.1} parent=1 // pred_check
      _
    $region7: #{tpu_custom_call.1} parent=1 // pred_check_branch
      %13 = sbr.rel (0) target = $region9
    $region8: #{tpu_custom_call.1} parent=1 // pred_region
      _
    $region9: #{tpu_custom_call.1} parent=1 // pred_fallthru
      _
    // Predicated region
    $region10: #{tpu_custom_call.1} parent=1 // pred_check
      _
    $region11: #{tpu_custom_call.1} parent=1 // pred_check_branch
      %15 = sbr.rel (0) target = $region13
    $region12: #{tpu_custom_call.1} parent=1 // pred_region
      %s17 = ssub.s32 5760, 5760
      %18 = vsyncadd [#allocation3], %s17
      %s19 = sshll.u32 [#allocation2], 4
      %s20 = int_to_ptr.vmem [resolvable:$true] %s19
      %25 = dma.hbm_to_vmem [thread:$0]  %s2, 5760, %s20, [#allocation3], 128, 128, 8
    $region13: #{tpu_custom_call.1} parent=1 // pred_fallthru
      _
    // Predicated region
    $region14: #{tpu_custom_call.1} parent=1 // pred_check
      _
    $region15: #{tpu_custom_call.1} parent=1 // pred_check_branch
      %27 = sbr.rel (0) target = $region17
    $region16: #{tpu_custom_call.1} parent=1 // pred_region
      %28 = dma.done [#allocation3], 5760
    $region17: #{tpu_custom_call.1} parent=1 // pred_fallthru
      _
    %v29 = vld [vmem:[#allocation2] sm:$0xff]
    %v30 = vld [vmem:[#allocation2 + $0x8] sm:$0xff]
    %v31 = vld [vmem:[#allocation2 + $0x10] sm:$0xff]
    %v32 = vld [vmem:[#allocation2 + $0x18] sm:$0xff]
    %v33 = vld [vmem:[#allocation2 + $0x20] sm:$0xff]
    %v34 = vld [vmem:[#allocation2 + $0x28] sm:$0xff]
    %v35 = vld [vmem:[#allocation2 + $0x30] sm:$0xff]
    %v36 = vld [vmem:[#allocation2 + $0x38] sm:$0xff]
    %v37 = vld [vmem:[#allocation2 + $0x40] sm:$0xff]
    %v38 = vld [vmem:[#allocation2 + $0x48] sm:$0xff]
    %v39 = vld [vmem:[#allocation2 + $0x50] sm:$0xff]
    %v40 = vld [vmem:[#allocation2 + $0x58] sm:$0xff]
    %v41 = vld [vmem:[#allocation2 + $0x60] sm:$0xff]
    %v42 = vld [vmem:[#allocation2 + $0x68] sm:$0xff]
    %v43 = vld [vmem:[#allocation2 + $0x70] sm:$0xff]
    %v44 = vld [vmem:[#allocation2 + $0x78] sm:$0xff]
    %v45 = vld [vmem:[#allocation2 + $0x80] sm:$0xff]
    %v46 = vld [vmem:[#allocation2 + $0x88] sm:$0xff]
    %v47 = vld [vmem:[#allocation2 + $0x90] sm:$0xff]
    %v48 = vld [vmem:[#allocation2 + $0x98] sm:$0xff]
    %v49 = vld [vmem:[#allocation2 + $0xa0] sm:$0xff]
    %v50 = vld [vmem:[#allocation2 + $0xa8] sm:$0xff]
    %v51 = vld [vmem:[#allocation2 + $0xb0] sm:$0xff]
    %v52 = vld [vmem:[#allocation2 + $0xb8] sm:$0xff]
    %v53 = vld [vmem:[#allocation2 + $0xc0] sm:$0xff]
    %v54 = vld [vmem:[#allocation2 + $0xc8] sm:$0xff]
    %v55 = vld [vmem:[#allocation2 + $0xd0] sm:$0xff]
    %v56 = vld [vmem:[#allocation2 + $0xd8] sm:$0xff]
    %v57 = vld [vmem:[#allocation2 + $0xe0] sm:$0xff]
    %v58 = vld [vmem:[#allocation2 + $0xe8] sm:$0xff]
    %v59 = vld [vmem:[#allocation2 + $0xf0] sm:$0xff]
    %v60 = vld [vmem:[#allocation2 + $0xf8] sm:$0xff]
    %v61 = vld [vmem:[#allocation2 + $0x100] sm:$0xff]
    %v62 = vld [vmem:[#allocation2 + $0x108] sm:$0xff]
    %v63 = vld [vmem:[#allocation2 + $0x110] sm:$0xff]
    %v64 = vld [vmem:[#allocation2 + $0x118] sm:$0xff]
    %v65 = vld [vmem:[#allocation2 + $0x120] sm:$0xff]
    %v66 = vld [vmem:[#allocation2 + $0x128] sm:$0xff]
    %v67 = vld [vmem:[#allocation2 + $0x130] sm:$0xff]
    %v68 = vld [vmem:[#allocation2 + $0x138] sm:$0xff]
    %v69 = vld [vmem:[#allocation2 + $0x140] sm:$0xff]
    %v70 = vld [vmem:[#allocation2 + $0x148] sm:$0xff]
    %v71 = vld [vmem:[#allocation2 + $0x150] sm:$0xff]
    %v72 = vld [vmem:[#allocation2 + $0x158] sm:$0xff]
    %v73 = vld [vmem:[#allocation2 + $0x160] sm:$0x1]
    %v74 = vld [vmem:[#allocation2 + $0x161] sm:$0x1]
    %v75 = vld [vmem:[#allocation2 + $0x162] sm:$0x1]
    %v76 = vld [vmem:[#allocation2 + $0x163] sm:$0x1]
    %v77 = vld [vmem:[#allocation2 + $0x164] sm:$0x1]
    %v78 = vld [vmem:[#allocation2 + $0x165] sm:$0x1]
    %v79 = vld [vmem:[#allocation2 + $0x166] sm:$0x1]
    %v80 = vlaneseq
    %v81 = vand.u32 %v80, 127
    %v82 = vld [vmem:[%s0] sm:$0xff]
    %v83 = vld [vmem:[%s0 + $0x8] sm:$0xff]
    %84 = vset.pattern.permute.xlu0 0
    %85 = vperm.xlu0 %84, %v82
    %v86 = vpop.permute.xlu0 %85
    %87 = vset.pattern.permute.xlu0 0
    %88 = vperm.xlu0 %87, %v83
    %v89 = vpop.permute.xlu0 %88
    %vm90 = vcmp.eq.s32.totalorder %v81, %v86
    %vm91 = vcmp.eq.s32.totalorder %v81, %v89
    %v92 = vsel %vm90, 1, 0
    %v93 = vsel %vm91, 1, 0
    %v94 = vcvt.s32.f32 %v92
    %v95 = vcvt.s32.f32 %v93
    %96 = vmatprep.subr.mxu0 0.0
    %97 = vmatpush1.msra.mxu0 %v29
    %98 = vmatprep.subr.mxu0 0.0
    %99 = vmatpush1.msra.mxu0 %v30
    %100 = vmatprep.subr.mxu0 0.0
    %101 = vmatpush1.msra.mxu0 %v31
    %102 = vmatprep.subr.mxu0 0.0
    %103 = vmatpush1.msra.mxu0 %v32
    %104 = vmatprep.subr.mxu0 0.0
    %105 = vmatpush1.msra.mxu0 %v33
    %106 = vmatprep.subr.mxu0 0.0
    %107 = vmatpush1.msra.mxu0 %v34
    %108 = vmatprep.subr.mxu0 0.0
    %109 = vmatpush1.msra.mxu0 %v35
    %110 = vmatprep.subr.mxu0 0.0
    %111 = vmatpush1.msra.mxu0 %v36
    %112 = vmatprep.subr.mxu0 0.0
    %113 = vmatpush1.msra.mxu0 %v37
    %114 = vmatprep.subr.mxu0 0.0
    %115 = vmatpush1.msra.mxu0 %v38
    %116 = vmatprep.subr.mxu0 0.0
    %117 = vmatpush1.msra.mxu0 %v39
    %118 = vmatprep.subr.mxu0 0.0
    %119 = vmatpush1.msra.mxu0 %v40
    %120 = vmatprep.subr.mxu0 0.0
    %121 = vmatpush1.msra.mxu0 %v41
    %122 = vmatprep.subr.mxu0 0.0
    %123 = vmatpush1.msra.mxu0 %v42
    %124 = vmatprep.subr.mxu0 0.0
    %125 = vmatpush1.msra.mxu0 %v43
    %126 = vmatprep.subr.mxu0 0.0
    %127 = vmatpush1.msra.mxu0 %v44
    %128 = vmatprep.subr.mxu0 0.0
    %129 = vmatpush1.msra.mxu0 0.0
    %130 = vmatprep.subr.mxu0 0.0
    %131 = vmatpush1.msra.mxu0 0.0
    %132 = vmatprep.subr.mxu0 0.0
    %133 = vmatpush1.msra.mxu0 0.0
    %134 = vmatprep.subr.mxu0 0.0
    %135 = vmatpush1.msra.mxu0 0.0
    %136 = vmatprep.subr.mxu0 0.0
    %137 = vmatpush1.msra.mxu0 0.0
    %138 = vmatprep.subr.mxu0 0.0
    %139 = vmatpush1.msra.mxu0 0.0
    %140 = vmatprep.subr.mxu0 0.0
    %141 = vmatpush1.msra.mxu0 0.0
    %142 = vmatprep.subr.mxu0 0.0
    %143 = vmatpush1.msra.mxu0 0.0
    %144 = vmatprep.subr.mxu0 0.0
    %145 = vmatpush1.msra.mxu0 0.0
    %146 = vmatprep.subr.mxu0 0.0
    %147 = vmatpush1.msra.mxu0 0.0
    %148 = vmatprep.subr.mxu0 0.0
    %149 = vmatpush1.msra.mxu0 0.0
    %150 = vmatprep.subr.mxu0 0.0
    %151 = vmatpush1.msra.mxu0 0.0
    %152 = vmatprep.subr.mxu0 0.0
    %153 = vmatpush1.msra.mxu0 0.0
    %154 = vmatprep.subr.mxu0 0.0
    %155 = vmatpush1.msra.mxu0 0.0
    %156 = vmatprep.subr.mxu0 0.0
    %157 = vmatpush1.msra.mxu0 0.0
    %158 = vmatprep.subr.mxu0 0.0
    %159 = vmatpush1.msra.mxu0 0.0
    %160 = vmatprep.mubr.f32.mxu0 0.0
    %161 = vmatmul.mubr.f32.gmra.mrb[0].mxu0 %v94
    %v162 = vpop.f32.mrb[0].mxu0
    %v163 = vadd.f32 0.0, %v162
    %v164 = vpop.f32.mrb[0].mxu0
    %165 = vmatprep.mubr.f32.mxu0 0.0
    %166 = vmatmul.mubr.f32.gmra.mrb[0].mxu0 %v95
    %v167 = vpop.f32.mrb[0].mxu0
    %v168 = vadd.f32 0.0, %v167
    %v169 = vpop.f32.mrb[0].mxu0
    %170 = vdwg.mxu0
    %v171 = vld [vmem:[%s1] sm:$0xff]
    %v172 = vld [vmem:[%s1 + $0x8] sm:$0xff]
    %v173 = vadd.f32 %v163, %v171
    %v174 = vadd.f32 %v168, %v172
    %vm175 = vcmask 261120
    %v176 = vsel %vm175, %v173, 0.0
    %177 = vadd.xlane.f32.xlu0 %v176
    %v178 = vpop.xlane.xlu0 %177
    %v179 = vsel %vm175, %v174, 0.0
    %180 = vadd.xlane.f32.xlu0 %v179
    %v181 = vpop.xlane.xlu0 %180
    %v182 = vrcp.pop 32.0
    %v183 = vmul.f32 %v178, %v182
    %v184 = vmul.f32 %v181, %v182
    %v185 = vsub.f32 %v173, %v183
    %v186 = vsub.f32 %v174, %v184
    %v187 = vmul.f32 %v185, %v185
    %v188 = vmul.f32 %v186, %v186
    %v189 = vsel %vm175, %v187, 0.0
    %190 = vadd.xlane.f32.xlu0 %v189
    %v191 = vpop.xlane.xlu0 %190
    %v192 = vsel %vm175, %v188, 0.0
    %193 = vadd.xlane.f32.xlu0 %v192
    %v194 = vpop.xlane.xlu0 %193
    %v195 = vmul.f32 %v191, %v182
    %v196 = vmul.f32 %v194, %v182
    %v197 = vadd.f32 %v195, 1e-05
    %v198 = vadd.f32 %v196, 1e-05
    %v199 = vrsqrt.pop %v197
    %v200 = vrsqrt.pop %v198
    %v201 = vmul.f32 %v185, %v199
    %v202 = vmul.f32 %v186, %v200
    %v203 = vlaneseq
    %v204 = vshrl.u32 %v203, 7
    %v205 = vsub.s32 0, %v204
    %v206 = vrot.slane %v73, %v205
    %v207 = vmul.f32 %v201, %v206
    %v208 = vmul.f32 %v202, %v206
    %v209 = vlaneseq
    %v210 = vshrl.u32 %v209, 7
    %v211 = vsub.s32 0, %v210
    %v212 = vrot.slane %v74, %v211
    %v213 = vadd.f32 %v207, %v212
    %v214 = vadd.f32 %v208, %v212
    %v216 = vsel %vm175, %v213, 0
    %v219 = vsel %vm175, %v214, 0
    %221 = vmatprep.subr.mxu0 0.0
    %222 = vmatpush1.msra.mxu0 %v45
    %223 = vmatprep.subr.mxu0 0.0
    %224 = vmatpush1.msra.mxu0 %v46
    %225 = vmatprep.subr.mxu0 0.0
    %226 = vmatpush1.msra.mxu0 %v47
    %227 = vmatprep.subr.mxu0 0.0
    %228 = vmatpush1.msra.mxu0 %v48
    %229 = vmatprep.subr.mxu0 0.0
    %230 = vmatpush1.msra.mxu0 0.0
    %231 = vmatprep.subr.mxu0 0.0
    %232 = vmatpush1.msra.mxu0 0.0
    %233 = vmatprep.subr.mxu0 0.0
    %234 = vmatpush1.msra.mxu0 0.0
    %235 = vmatprep.subr.mxu0 0.0
    %236 = vmatpush1.msra.mxu0 0.0
    %237 = vmatprep.subr.mxu0 0.0
    %238 = vmatpush1.msra.mxu0 0.0
    %239 = vmatprep.subr.mxu0 0.0
    %240 = vmatpush1.msra.mxu0 0.0
    %241 = vmatprep.subr.mxu0 0.0
    %242 = vmatpush1.msra.mxu0 0.0
    %243 = vmatprep.subr.mxu0 0.0
    %244 = vmatpush1.msra.mxu0 0.0
    %245 = vmatprep.subr.mxu0 0.0
    %246 = vmatpush1.msra.mxu0 0.0
    %247 = vmatprep.subr.mxu0 0.0
    %248 = vmatpush1.msra.mxu0 0.0
    %249 = vmatprep.subr.mxu0 0.0
    %250 = vmatpush1.msra.mxu0 0.0
    %251 = vmatprep.subr.mxu0 0.0
    %252 = vmatpush1.msra.mxu0 0.0
    %253 = vmatprep.subr.mxu0 0.0
    %254 = vmatpush1.msra.mxu0 0.0
    %255 = vmatprep.subr.mxu0 0.0
    %256 = vmatpush1.msra.mxu0 0.0
    %257 = vmatprep.subr.mxu0 0.0
    %258 = vmatpush1.msra.mxu0 0.0
    %259 = vmatprep.subr.mxu0 0.0
    %260 = vmatpush1.msra.mxu0 0.0
    %261 = vmatprep.subr.mxu0 0.0
    %262 = vmatpush1.msra.mxu0 0.0
    %263 = vmatprep.subr.mxu0 0.0
    %264 = vmatpush1.msra.mxu0 0.0
    %265 = vmatprep.subr.mxu0 0.0
    %266 = vmatpush1.msra.mxu0 0.0
    %267 = vmatprep.subr.mxu0 0.0
    %268 = vmatpush1.msra.mxu0 0.0
    %269 = vmatprep.subr.mxu0 0.0
    %270 = vmatpush1.msra.mxu0 0.0
    %271 = vmatprep.subr.mxu0 0.0
    %272 = vmatpush1.msra.mxu0 0.0
    %273 = vmatprep.subr.mxu0 0.0
    %274 = vmatpush1.msra.mxu0 0.0
    %275 = vmatprep.subr.mxu0 0.0
    %276 = vmatpush1.msra.mxu0 0.0
    %277 = vmatprep.subr.mxu0 0.0
    %278 = vmatpush1.msra.mxu0 0.0
    %279 = vmatprep.subr.mxu0 0.0
    %280 = vmatpush1.msra.mxu0 0.0
    %281 = vmatprep.subr.mxu0 0.0
    %282 = vmatpush1.msra.mxu0 0.0
    %283 = vmatprep.subr.mxu0 0.0
    %284 = vmatpush1.msra.mxu0 0.0
    %285 = vmatprep.mubr.f32.mxu0 0.0
    %286 = vmatmul.mubr.f32.gmra.mrb[0].mxu0 %v216
    %v287 = vpop.f32.mrb[0].mxu0
    %v288 = vadd.f32 0.0, %v287
    %v289 = vpop.f32.mrb[0].mxu0
    %290 = vmatprep.mubr.f32.mxu0 0.0
    %291 = vmatmul.mubr.f32.gmra.mrb[0].mxu0 %v219
    %v292 = vpop.f32.mrb[0].mxu0
    %v293 = vadd.f32 0.0, %v292
    %v294 = vpop.f32.mrb[0].mxu0
    %295 = vdwg.mxu0
    %298 = vrot.lane.b32.xlu0 %v288, 120
    %v299 = vpop.permute.xlu0 %298
    %300 = vrot.lane.b32.xlu0 %v293, 120
    %v301 = vpop.permute.xlu0 %300
    %302 = vrot.lane.b32.xlu0 %v288, 112
    %v303 = vpop.permute.xlu0 %302
    %304 = vrot.lane.b32.xlu0 %v293, 112
    %v305 = vpop.permute.xlu0 %304
    %306 = vrot.lane.b32.xlu0 %v288, 104
    %v307 = vpop.permute.xlu0 %306
    %308 = vrot.lane.b32.xlu0 %v293, 104
    %v309 = vpop.permute.xlu0 %308
    %310 = vrot.lane.b32.xlu0 %v288, 96
    %v311 = vpop.permute.xlu0 %310
    %vm312 = vcmask 64512
    %v313 = vsel %vm312, %v288, 0
    %v315 = vsel %vm312, %v311, 0
    %317 = vmatprep.subr.mxu0 0.0
    %318 = vmatpush1.xpose.msra.mxu0 %v315
    %319 = vmatprep.subr.mxu0 0.0
    %320 = vmatpush1.xpose.msra.mxu0 0.0
    %321 = vmatprep.subr.mxu0 0.0
    %322 = vmatpush1.xpose.msra.mxu0 0.0
    %323 = vmatprep.subr.mxu0 0.0
    %324 = vmatpush1.xpose.msra.mxu0 0.0
    %325 = vmatprep.subr.mxu0 0.0
    %326 = vmatpush1.xpose.msra.mxu0 0.0
    %327 = vmatprep.subr.mxu0 0.0
    %328 = vmatpush1.xpose.msra.mxu0 0.0
    %329 = vmatprep.subr.mxu0 0.0
    %330 = vmatpush1.xpose.msra.mxu0 0.0
    %331 = vmatprep.subr.mxu0 0.0
    %332 = vmatpush1.xpose.msra.mxu0 0.0
    %333 = vmatprep.subr.mxu0 0.0
    %334 = vmatpush1.xpose.msra.mxu0 0.0
    %335 = vmatprep.subr.mxu0 0.0
    %336 = vmatpush1.xpose.msra.mxu0 0.0
    %337 = vmatprep.subr.mxu0 0.0
    %338 = vmatpush1.xpose.msra.mxu0 0.0
    %339 = vmatprep.subr.mxu0 0.0
    %340 = vmatpush1.xpose.msra.mxu0 0.0
    %341 = vmatprep.subr.mxu0 0.0
    %342 = vmatpush1.xpose.msra.mxu0 0.0
    %343 = vmatprep.subr.mxu0 0.0
    %344 = vmatpush1.xpose.msra.mxu0 0.0
    %345 = vmatprep.subr.mxu0 0.0
    %346 = vmatpush1.xpose.msra.mxu0 0.0
    %347 = vmatprep.subr.mxu0 0.0
    %348 = vmatpush1.xpose.msra.mxu0 0.0
    %349 = vmatprep.subr.mxu0 0.0
    %350 = vmatpush1.xpose.msra.mxu0 0.0
    %351 = vmatprep.subr.mxu0 0.0
    %352 = vmatpush1.xpose.msra.mxu0 0.0
    %353 = vmatprep.subr.mxu0 0.0
    %354 = vmatpush1.xpose.msra.mxu0 0.0
    %355 = vmatprep.subr.mxu0 0.0
    %356 = vmatpush1.xpose.msra.mxu0 0.0
    %357 = vmatprep.subr.mxu0 0.0
    %358 = vmatpush1.xpose.msra.mxu0 0.0
    %359 = vmatprep.subr.mxu0 0.0
    %360 = vmatpush1.xpose.msra.mxu0 0.0
    %361 = vmatprep.subr.mxu0 0.0
    %362 = vmatpush1.xpose.msra.mxu0 0.0
    %363 = vmatprep.subr.mxu0 0.0
    %364 = vmatpush1.xpose.msra.mxu0 0.0
    %365 = vmatprep.subr.mxu0 0.0
    %366 = vmatpush1.xpose.msra.mxu0 0.0
    %367 = vmatprep.subr.mxu0 0.0
    %368 = vmatpush1.xpose.msra.mxu0 0.0
    %369 = vmatprep.subr.mxu0 0.0
    %370 = vmatpush1.xpose.msra.mxu0 0.0
    %371 = vmatprep.subr.mxu0 0.0
    %372 = vmatpush1.xpose.msra.mxu0 0.0
    %373 = vmatprep.subr.mxu0 0.0
    %374 = vmatpush1.xpose.msra.mxu0 0.0
    %375 = vmatprep.subr.mxu0 0.0
    %376 = vmatpush1.xpose.msra.mxu0 0.0
    %377 = vmatprep.subr.mxu0 0.0
    %378 = vmatpush1.xpose.msra.mxu0 0.0
    %379 = vmatprep.subr.mxu0 0.0
    %380 = vmatpush1.xpose.msra.mxu0 0.0
    %381 = vmatprep.mubr.f32.mxu0 0.0
    %382 = vmatmul.mubr.f32.gmra.mrb[0].mxu0 %v313
    %v383 = vpop.f32.mrb[0].mxu0
    %v384 = vadd.f32 0.0, %v383
    %v385 = vpop.f32.mrb[0].mxu0
    %386 = vdwg.mxu0
    %387 = vrot.lane.b32.xlu0 %v293, 96
    %v388 = vpop.permute.xlu0 %387
    %v389 = vsel %vm312, %v293, 0
    %v391 = vsel %vm312, %v388, 0
    %393 = vmatprep.subr.mxu0 0.0
    %394 = vmatpush1.xpose.msra.mxu0 %v391
    %395 = vmatprep.subr.mxu0 0.0
    %396 = vmatpush1.xpose.msra.mxu0 0.0
    %397 = vmatprep.subr.mxu0 0.0
    %398 = vmatpush1.xpose.msra.mxu0 0.0
    %399 = vmatprep.subr.mxu0 0.0
    %400 = vmatpush1.xpose.msra.mxu0 0.0
    %401 = vmatprep.subr.mxu0 0.0
    %402 = vmatpush1.xpose.msra.mxu0 0.0
    %403 = vmatprep.subr.mxu0 0.0
    %404 = vmatpush1.xpose.msra.mxu0 0.0
    %405 = vmatprep.subr.mxu0 0.0
    %406 = vmatpush1.xpose.msra.mxu0 0.0
    %407 = vmatprep.subr.mxu0 0.0
    %408 = vmatpush1.xpose.msra.mxu0 0.0
    %409 = vmatprep.subr.mxu0 0.0
    %410 = vmatpush1.xpose.msra.mxu0 0.0
    %411 = vmatprep.subr.mxu0 0.0
    %412 = vmatpush1.xpose.msra.mxu0 0.0
    %413 = vmatprep.subr.mxu0 0.0
    %414 = vmatpush1.xpose.msra.mxu0 0.0
    %415 = vmatprep.subr.mxu0 0.0
    %416 = vmatpush1.xpose.msra.mxu0 0.0
    %417 = vmatprep.subr.mxu0 0.0
    %418 = vmatpush1.xpose.msra.mxu0 0.0
    %419 = vmatprep.subr.mxu0 0.0
    %420 = vmatpush1.xpose.msra.mxu0 0.0
    %421 = vmatprep.subr.mxu0 0.0
    %422 = vmatpush1.xpose.msra.mxu0 0.0
    %423 = vmatprep.subr.mxu0 0.0
    %424 = vmatpush1.xpose.msra.mxu0 0.0
    %425 = vmatprep.subr.mxu0 0.0
    %426 = vmatpush1.xpose.msra.mxu0 0.0
    %427 = vmatprep.subr.mxu0 0.0
    %428 = vmatpush1.xpose.msra.mxu0 0.0
    %429 = vmatprep.subr.mxu0 0.0
    %430 = vmatpush1.xpose.msra.mxu0 0.0
    %431 = vmatprep.subr.mxu0 0.0
    %432 = vmatpush1.xpose.msra.mxu0 0.0
    %433 = vmatprep.subr.mxu0 0.0
    %434 = vmatpush1.xpose.msra.mxu0 0.0
    %435 = vmatprep.subr.mxu0 0.0
    %436 = vmatpush1.xpose.msra.mxu0 0.0
    %437 = vmatprep.subr.mxu0 0.0
    %438 = vmatpush1.xpose.msra.mxu0 0.0
    %439 = vmatprep.subr.mxu0 0.0
    %440 = vmatpush1.xpose.msra.mxu0 0.0
    %441 = vmatprep.subr.mxu0 0.0
    %442 = vmatpush1.xpose.msra.mxu0 0.0
    %443 = vmatprep.subr.mxu0 0.0
    %444 = vmatpush1.xpose.msra.mxu0 0.0
    %445 = vmatprep.subr.mxu0 0.0
    %446 = vmatpush1.xpose.msra.mxu0 0.0
    %447 = vmatprep.subr.mxu0 0.0
    %448 = vmatpush1.xpose.msra.mxu0 0.0
    %449 = vmatprep.subr.mxu0 0.0
    %450 = vmatpush1.xpose.msra.mxu0 0.0
    %451 = vmatprep.subr.mxu0 0.0
    %452 = vmatpush1.xpose.msra.mxu0 0.0
    %453 = vmatprep.subr.mxu0 0.0
    %454 = vmatpush1.xpose.msra.mxu0 0.0
    %455 = vmatprep.subr.mxu0 0.0
    %456 = vmatpush1.xpose.msra.mxu0 0.0
    %457 = vmatprep.mubr.f32.mxu0 0.0
    %458 = vmatmul.mubr.f32.gmra.mrb[0].mxu0 %v389
    %v459 = vpop.f32.mrb[0].mxu0
    %v460 = vadd.f32 0.0, %v459
    %v461 = vpop.f32.mrb[0].mxu0
    %462 = vdwg.mxu0
    %463 = vrot.lane.b32.xlu0 %v299, 96
    %v464 = vpop.permute.xlu0 %463
    %v465 = vsel %vm312, %v299, 0
    %v467 = vsel %vm312, %v464, 0
    %469 = vmatprep.subr.mxu0 0.0
    %470 = vmatpush1.xpose.msra.mxu0 %v467
    %471 = vmatprep.subr.mxu0 0.0
    %472 = vmatpush1.xpose.msra.mxu0 0.0
    %473 = vmatprep.subr.mxu0 0.0
    %474 = vmatpush1.xpose.msra.mxu0 0.0
    %475 = vmatprep.subr.mxu0 0.0
    %476 = vmatpush1.xpose.msra.mxu0 0.0
    %477 = vmatprep.subr.mxu0 0.0
    %478 = vmatpush1.xpose.msra.mxu0 0.0
    %479 = vmatprep.subr.mxu0 0.0
    %480 = vmatpush1.xpose.msra.mxu0 0.0
    %481 = vmatprep.subr.mxu0 0.0
    %482 = vmatpush1.xpose.msra.mxu0 0.0
    %483 = vmatprep.subr.mxu0 0.0
    %484 = vmatpush1.xpose.msra.mxu0 0.0
    %485 = vmatprep.subr.mxu0 0.0
    %486 = vmatpush1.xpose.msra.mxu0 0.0
    %487 = vmatprep.subr.mxu0 0.0
    %488 = vmatpush1.xpose.msra.mxu0 0.0
    %489 = vmatprep.subr.mxu0 0.0
    %490 = vmatpush1.xpose.msra.mxu0 0.0
    %491 = vmatprep.subr.mxu0 0.0
    %492 = vmatpush1.xpose.msra.mxu0 0.0
    %493 = vmatprep.subr.mxu0 0.0
    %494 = vmatpush1.xpose.msra.mxu0 0.0
    %495 = vmatprep.subr.mxu0 0.0
    %496 = vmatpush1.xpose.msra.mxu0 0.0
    %497 = vmatprep.subr.mxu0 0.0
    %498 = vmatpush1.xpose.msra.mxu0 0.0
    %499 = vmatprep.subr.mxu0 0.0
    %500 = vmatpush1.xpose.msra.mxu0 0.0
    %501 = vmatprep.subr.mxu0 0.0
    %502 = vmatpush1.xpose.msra.mxu0 0.0
    %503 = vmatprep.subr.mxu0 0.0
    %504 = vmatpush1.xpose.msra.mxu0 0.0
    %505 = vmatprep.subr.mxu0 0.0
    %506 = vmatpush1.xpose.msra.mxu0 0.0
    %507 = vmatprep.subr.mxu0 0.0
    %508 = vmatpush1.xpose.msra.mxu0 0.0
    %509 = vmatprep.subr.mxu0 0.0
    %510 = vmatpush1.xpose.msra.mxu0 0.0
    %511 = vmatprep.subr.mxu0 0.0
    %512 = vmatpush1.xpose.msra.mxu0 0.0
    %513 = vmatprep.subr.mxu0 0.0
    %514 = vmatpush1.xpose.msra.mxu0 0.0
    %515 = vmatprep.subr.mxu0 0.0
    %516 = vmatpush1.xpose.msra.mxu0 0.0
    %517 = vmatprep.subr.mxu0 0.0
    %518 = vmatpush1.xpose.msra.mxu0 0.0
    %519 = vmatprep.subr.mxu0 0.0
    %520 = vmatpush1.xpose.msra.mxu0 0.0
    %521 = vmatprep.subr.mxu0 0.0
    %522 = vmatpush1.xpose.msra.mxu0 0.0
    %523 = vmatprep.subr.mxu0 0.0
    %524 = vmatpush1.xpose.msra.mxu0 0.0
    %525 = vmatprep.subr.mxu0 0.0
    %526 = vmatpush1.xpose.msra.mxu0 0.0
    %527 = vmatprep.subr.mxu0 0.0
    %528 = vmatpush1.xpose.msra.mxu0 0.0
    %529 = vmatprep.subr.mxu0 0.0
    %530 = vmatpush1.xpose.msra.mxu0 0.0
    %531 = vmatprep.subr.mxu0 0.0
    %532 = vmatpush1.xpose.msra.mxu0 0.0
    %533 = vmatprep.mubr.f32.mxu0 0.0
    %534 = vmatmul.mubr.f32.gmra.mrb[0].mxu0 %v465
    %v535 = vpop.f32.mrb[0].mxu0
    %v536 = vadd.f32 0.0, %v535
    %v537 = vpop.f32.mrb[0].mxu0
    %538 = vdwg.mxu0
    %539 = vrot.lane.b32.xlu0 %v301, 96
    %v540 = vpop.permute.xlu0 %539
    %v541 = vsel %vm312, %v301, 0
    %v543 = vsel %vm312, %v540, 0
    %545 = vmatprep.subr.mxu0 0.0
    %546 = vmatpush1.xpose.msra.mxu0 %v543
    %547 = vmatprep.subr.mxu0 0.0
    %548 = vmatpush1.xpose.msra.mxu0 0.0
    %549 = vmatprep.subr.mxu0 0.0
    %550 = vmatpush1.xpose.msra.mxu0 0.0
    %551 = vmatprep.subr.mxu0 0.0
    %552 = vmatpush1.xpose.msra.mxu0 0.0
    %553 = vmatprep.subr.mxu0 0.0
    %554 = vmatpush1.xpose.msra.mxu0 0.0
    %555 = vmatprep.subr.mxu0 0.0
    %556 = vmatpush1.xpose.msra.mxu0 0.0
    %557 = vmatprep.subr.mxu0 0.0
    %558 = vmatpush1.xpose.msra.mxu0 0.0
    %559 = vmatprep.subr.mxu0 0.0
    %560 = vmatpush1.xpose.msra.mxu0 0.0
    %561 = vmatprep.subr.mxu0 0.0
    %562 = vmatpush1.xpose.msra.mxu0 0.0
    %563 = vmatprep.subr.mxu0 0.0
    %564 = vmatpush1.xpose.msra.mxu0 0.0
    %565 = vmatprep.subr.mxu0 0.0
    %566 = vmatpush1.xpose.msra.mxu0 0.0
    %567 = vmatprep.subr.mxu0 0.0
    %568 = vmatpush1.xpose.msra.mxu0 0.0
    %569 = vmatprep.subr.mxu0 0.0
    %570 = vmatpush1.xpose.msra.mxu0 0.0
    %571 = vmatprep.subr.mxu0 0.0
    %572 = vmatpush1.xpose.msra.mxu0 0.0
    %573 = vmatprep.subr.mxu0 0.0
    %574 = vmatpush1.xpose.msra.mxu0 0.0
    %575 = vmatprep.subr.mxu0 0.0
    %576 = vmatpush1.xpose.msra.mxu0 0.0
    %577 = vmatprep.subr.mxu0 0.0
    %578 = vmatpush1.xpose.msra.mxu0 0.0
    %579 = vmatprep.subr.mxu0 0.0
    %580 = vmatpush1.xpose.msra.mxu0 0.0
    %581 = vmatprep.subr.mxu0 0.0
    %582 = vmatpush1.xpose.msra.mxu0 0.0
    %583 = vmatprep.subr.mxu0 0.0
    %584 = vmatpush1.xpose.msra.mxu0 0.0
    %585 = vmatprep.subr.mxu0 0.0
    %586 = vmatpush1.xpose.msra.mxu0 0.0
    %587 = vmatprep.subr.mxu0 0.0
    %588 = vmatpush1.xpose.msra.mxu0 0.0
    %589 = vmatprep.subr.mxu0 0.0
    %590 = vmatpush1.xpose.msra.mxu0 0.0
    %591 = vmatprep.subr.mxu0 0.0
    %592 = vmatpush1.xpose.msra.mxu0 0.0
    %593 = vmatprep.subr.mxu0 0.0
    %594 = vmatpush1.xpose.msra.mxu0 0.0
    %595 = vmatprep.subr.mxu0 0.0
    %596 = vmatpush1.xpose.msra.mxu0 0.0
    %597 = vmatprep.subr.mxu0 0.0
    %598 = vmatpush1.xpose.msra.mxu0 0.0
    %599 = vmatprep.subr.mxu0 0.0
    %600 = vmatpush1.xpose.msra.mxu0 0.0
    %601 = vmatprep.subr.mxu0 0.0
    %602 = vmatpush1.xpose.msra.mxu0 0.0
    %603 = vmatprep.subr.mxu0 0.0
    %604 = vmatpush1.xpose.msra.mxu0 0.0
    %605 = vmatprep.subr.mxu0 0.0
    %606 = vmatpush1.xpose.msra.mxu0 0.0
    %607 = vmatprep.subr.mxu0 0.0
    %608 = vmatpush1.xpose.msra.mxu0 0.0
    %609 = vmatprep.mubr.f32.mxu0 0.0
    %610 = vmatmul.mubr.f32.gmra.mrb[0].mxu0 %v541
    %v611 = vpop.f32.mrb[0].mxu0
    %v612 = vadd.f32 0.0, %v611
    %v613 = vpop.f32.mrb[0].mxu0
    %614 = vdwg.mxu0
    %615 = vrot.lane.b32.xlu0 %v303, 96
    %v616 = vpop.permute.xlu0 %615
    %v617 = vsel %vm312, %v303, 0
    %v619 = vsel %vm312, %v616, 0
    %621 = vmatprep.subr.mxu0 0.0
    %622 = vmatpush1.xpose.msra.mxu0 %v619
    %623 = vmatprep.subr.mxu0 0.0
    %624 = vmatpush1.xpose.msra.mxu0 0.0
    %625 = vmatprep.subr.mxu0 0.0
    %626 = vmatpush1.xpose.msra.mxu0 0.0
    %627 = vmatprep.subr.mxu0 0.0
    %628 = vmatpush1.xpose.msra.mxu0 0.0
    %629 = vmatprep.subr.mxu0 0.0
    %630 = vmatpush1.xpose.msra.mxu0 0.0
    %631 = vmatprep.subr.mxu0 0.0
    %632 = vmatpush1.xpose.msra.mxu0 0.0
    %633 = vmatprep.subr.mxu0 0.0
    %634 = vmatpush1.xpose.msra.mxu0 0.0
    %635 = vmatprep.subr.mxu0 0.0
    %636 = vmatpush1.xpose.msra.mxu0 0.0
    %637 = vmatprep.subr.mxu0 0.0
    %638 = vmatpush1.xpose.msra.mxu0 0.0
    %639 = vmatprep.subr.mxu0 0.0
    %640 = vmatpush1.xpose.msra.mxu0 0.0
    %641 = vmatprep.subr.mxu0 0.0
    %642 = vmatpush1.xpose.msra.mxu0 0.0
    %643 = vmatprep.subr.mxu0 0.0
    %644 = vmatpush1.xpose.msra.mxu0 0.0
    %645 = vmatprep.subr.mxu0 0.0
    %646 = vmatpush1.xpose.msra.mxu0 0.0
    %647 = vmatprep.subr.mxu0 0.0
    %648 = vmatpush1.xpose.msra.mxu0 0.0
    %649 = vmatprep.subr.mxu0 0.0
    %650 = vmatpush1.xpose.msra.mxu0 0.0
    %651 = vmatprep.subr.mxu0 0.0
    %652 = vmatpush1.xpose.msra.mxu0 0.0
    %653 = vmatprep.subr.mxu0 0.0
    %654 = vmatpush1.xpose.msra.mxu0 0.0
    %655 = vmatprep.subr.mxu0 0.0
    %656 = vmatpush1.xpose.msra.mxu0 0.0
    %657 = vmatprep.subr.mxu0 0.0
    %658 = vmatpush1.xpose.msra.mxu0 0.0
    %659 = vmatprep.subr.mxu0 0.0
    %660 = vmatpush1.xpose.msra.mxu0 0.0
    %661 = vmatprep.subr.mxu0 0.0
    %662 = vmatpush1.xpose.msra.mxu0 0.0
    %663 = vmatprep.subr.mxu0 0.0
    %664 = vmatpush1.xpose.msra.mxu0 0.0
    %665 = vmatprep.subr.mxu0 0.0
    %666 = vmatpush1.xpose.msra.mxu0 0.0
    %667 = vmatprep.subr.mxu0 0.0
    %668 = vmatpush1.xpose.msra.mxu0 0.0
    %669 = vmatprep.subr.mxu0 0.0
    %670 = vmatpush1.xpose.msra.mxu0 0.0
    %671 = vmatprep.subr.mxu0 0.0
    %672 = vmatpush1.xpose.msra.mxu0 0.0
    %673 = vmatprep.subr.mxu0 0.0
    %674 = vmatpush1.xpose.msra.mxu0 0.0
    %675 = vmatprep.subr.mxu0 0.0
    %676 = vmatpush1.xpose.msra.mxu0 0.0
    %677 = vmatprep.subr.mxu0 0.0
    %678 = vmatpush1.xpose.msra.mxu0 0.0
    %679 = vmatprep.subr.mxu0 0.0
    %680 = vmatpush1.xpose.msra.mxu0 0.0
    %681 = vmatprep.subr.mxu0 0.0
    %682 = vmatpush1.xpose.msra.mxu0 0.0
    %683 = vmatprep.subr.mxu0 0.0
    %684 = vmatpush1.xpose.msra.mxu0 0.0
    %685 = vmatprep.mubr.f32.mxu0 0.0
    %686 = vmatmul.mubr.f32.gmra.mrb[0].mxu0 %v617
    %v687 = vpop.f32.mrb[0].mxu0
    %v688 = vadd.f32 0.0, %v687
    %v689 = vpop.f32.mrb[0].mxu0
    %690 = vdwg.mxu0
    %691 = vrot.lane.b32.xlu0 %v305, 96
    %v692 = vpop.permute.xlu0 %691
    %v693 = vsel %vm312, %v305, 0
    %v695 = vsel %vm312, %v692, 0
    %697 = vmatprep.subr.mxu0 0.0
    %698 = vmatpush1.xpose.msra.mxu0 %v695
    %699 = vmatprep.subr.mxu0 0.0
    %700 = vmatpush1.xpose.msra.mxu0 0.0
    %701 = vmatprep.subr.mxu0 0.0
    %702 = vmatpush1.xpose.msra.mxu0 0.0
    %703 = vmatprep.subr.mxu0 0.0
    %704 = vmatpush1.xpose.msra.mxu0 0.0
    %705 = vmatprep.subr.mxu0 0.0
    %706 = vmatpush1.xpose.msra.mxu0 0.0
    %707 = vmatprep.subr.mxu0 0.0
    %708 = vmatpush1.xpose.msra.mxu0 0.0
    %709 = vmatprep.subr.mxu0 0.0
    %710 = vmatpush1.xpose.msra.mxu0 0.0
    %711 = vmatprep.subr.mxu0 0.0
    %712 = vmatpush1.xpose.msra.mxu0 0.0
    %713 = vmatprep.subr.mxu0 0.0
    %714 = vmatpush1.xpose.msra.mxu0 0.0
    %715 = vmatprep.subr.mxu0 0.0
    %716 = vmatpush1.xpose.msra.mxu0 0.0
    %717 = vmatprep.subr.mxu0 0.0
    %718 = vmatpush1.xpose.msra.mxu0 0.0
    %719 = vmatprep.subr.mxu0 0.0
    %720 = vmatpush1.xpose.msra.mxu0 0.0
    %721 = vmatprep.subr.mxu0 0.0
    %722 = vmatpush1.xpose.msra.mxu0 0.0
    %723 = vmatprep.subr.mxu0 0.0
    %724 = vmatpush1.xpose.msra.mxu0 0.0
    %725 = vmatprep.subr.mxu0 0.0
    %726 = vmatpush1.xpose.msra.mxu0 0.0
    %727 = vmatprep.subr.mxu0 0.0
    %728 = vmatpush1.xpose.msra.mxu0 0.0
    %729 = vmatprep.subr.mxu0 0.0
    %730 = vmatpush1.xpose.msra.mxu0 0.0
    %731 = vmatprep.subr.mxu0 0.0
    %732 = vmatpush1.xpose.msra.mxu0 0.0
    %733 = vmatprep.subr.mxu0 0.0
    %734 = vmatpush1.xpose.msra.mxu0 0.0
    %735 = vmatprep.subr.mxu0 0.0
    %736 = vmatpush1.xpose.msra.mxu0 0.0
    %737 = vmatprep.subr.mxu0 0.0
    %738 = vmatpush1.xpose.msra.mxu0 0.0
    %739 = vmatprep.subr.mxu0 0.0
    %740 = vmatpush1.xpose.msra.mxu0 0.0
    %741 = vmatprep.subr.mxu0 0.0
    %742 = vmatpush1.xpose.msra.mxu0 0.0
    %743 = vmatprep.subr.mxu0 0.0
    %744 = vmatpush1.xpose.msra.mxu0 0.0
    %745 = vmatprep.subr.mxu0 0.0
    %746 = vmatpush1.xpose.msra.mxu0 0.0
    %747 = vmatprep.subr.mxu0 0.0
    %748 = vmatpush1.xpose.msra.mxu0 0.0
    %749 = vmatprep.subr.mxu0 0.0
    %750 = vmatpush1.xpose.msra.mxu0 0.0
    %751 = vmatprep.subr.mxu0 0.0
    %752 = vmatpush1.xpose.msra.mxu0 0.0
    %753 = vmatprep.subr.mxu0 0.0
    %754 = vmatpush1.xpose.msra.mxu0 0.0
    %755 = vmatprep.subr.mxu0 0.0
    %756 = vmatpush1.xpose.msra.mxu0 0.0
    %757 = vmatprep.subr.mxu0 0.0
    %758 = vmatpush1.xpose.msra.mxu0 0.0
    %759 = vmatprep.subr.mxu0 0.0
    %760 = vmatpush1.xpose.msra.mxu0 0.0
    %761 = vmatprep.mubr.f32.mxu0 0.0
    %762 = vmatmul.mubr.f32.gmra.mrb[0].mxu0 %v693
    %v763 = vpop.f32.mrb[0].mxu0
    %v764 = vadd.f32 0.0, %v763
    %v765 = vpop.f32.mrb[0].mxu0
    %766 = vdwg.mxu0
    %767 = vrot.lane.b32.xlu0 %v307, 96
    %v768 = vpop.permute.xlu0 %767
    %v769 = vsel %vm312, %v307, 0
    %v771 = vsel %vm312, %v768, 0
    %773 = vmatprep.subr.mxu0 0.0
    %774 = vmatpush1.xpose.msra.mxu0 %v771
    %775 = vmatprep.subr.mxu0 0.0
    %776 = vmatpush1.xpose.msra.mxu0 0.0
    %777 = vmatprep.subr.mxu0 0.0
    %778 = vmatpush1.xpose.msra.mxu0 0.0
    %779 = vmatprep.subr.mxu0 0.0
    %780 = vmatpush1.xpose.msra.mxu0 0.0
    %781 = vmatprep.subr.mxu0 0.0
    %782 = vmatpush1.xpose.msra.mxu0 0.0
    %783 = vmatprep.subr.mxu0 0.0
    %784 = vmatpush1.xpose.msra.mxu0 0.0
    %785 = vmatprep.subr.mxu0 0.0
    %786 = vmatpush1.xpose.msra.mxu0 0.0
    %787 = vmatprep.subr.mxu0 0.0
    %788 = vmatpush1.xpose.msra.mxu0 0.0
    %789 = vmatprep.subr.mxu0 0.0
    %790 = vmatpush1.xpose.msra.mxu0 0.0
    %791 = vmatprep.subr.mxu0 0.0
    %792 = vmatpush1.xpose.msra.mxu0 0.0
    %793 = vmatprep.subr.mxu0 0.0
    %794 = vmatpush1.xpose.msra.mxu0 0.0
    %795 = vmatprep.subr.mxu0 0.0
    %796 = vmatpush1.xpose.msra.mxu0 0.0
    %797 = vmatprep.subr.mxu0 0.0
    %798 = vmatpush1.xpose.msra.mxu0 0.0
    %799 = vmatprep.subr.mxu0 0.0
    %800 = vmatpush1.xpose.msra.mxu0 0.0
    %801 = vmatprep.subr.mxu0 0.0
    %802 = vmatpush1.xpose.msra.mxu0 0.0
    %803 = vmatprep.subr.mxu0 0.0
    %804 = vmatpush1.xpose.msra.mxu0 0.0
    %805 = vmatprep.subr.mxu0 0.0
    %806 = vmatpush1.xpose.msra.mxu0 0.0
    %807 = vmatprep.subr.mxu0 0.0
    %808 = vmatpush1.xpose.msra.mxu0 0.0
    %809 = vmatprep.subr.mxu0 0.0
    %810 = vmatpush1.xpose.msra.mxu0 0.0
    %811 = vmatprep.subr.mxu0 0.0
    %812 = vmatpush1.xpose.msra.mxu0 0.0
    %813 = vmatprep.subr.mxu0 0.0
    %814 = vmatpush1.xpose.msra.mxu0 0.0
    %815 = vmatprep.subr.mxu0 0.0
    %816 = vmatpush1.xpose.msra.mxu0 0.0
    %817 = vmatprep.subr.mxu0 0.0
    %818 = vmatpush1.xpose.msra.mxu0 0.0
    %819 = vmatprep.subr.mxu0 0.0
    %820 = vmatpush1.xpose.msra.mxu0 0.0
    %821 = vmatprep.subr.mxu0 0.0
    %822 = vmatpush1.xpose.msra.mxu0 0.0
    %823 = vmatprep.subr.mxu0 0.0
    %824 = vmatpush1.xpose.msra.mxu0 0.0
    %825 = vmatprep.subr.mxu0 0.0
    %826 = vmatpush1.xpose.msra.mxu0 0.0
    %827 = vmatprep.subr.mxu0 0.0
    %828 = vmatpush1.xpose.msra.mxu0 0.0
    %829 = vmatprep.subr.mxu0 0.0
    %830 = vmatpush1.xpose.msra.mxu0 0.0
    %831 = vmatprep.subr.mxu0 0.0
    %832 = vmatpush1.xpose.msra.mxu0 0.0
    %833 = vmatprep.subr.mxu0 0.0
    %834 = vmatpush1.xpose.msra.mxu0 0.0
    %835 = vmatprep.subr.mxu0 0.0
    %836 = vmatpush1.xpose.msra.mxu0 0.0
    %837 = vmatprep.mubr.f32.mxu0 0.0
    %838 = vmatmul.mubr.f32.gmra.mrb[0].mxu0 %v769
    %v839 = vpop.f32.mrb[0].mxu0
    %v840 = vadd.f32 0.0, %v839
    %v841 = vpop.f32.mrb[0].mxu0
    %842 = vdwg.mxu0
    %843 = vrot.lane.b32.xlu0 %v309, 96
    %v844 = vpop.permute.xlu0 %843
    %v845 = vsel %vm312, %v309, 0
    %v847 = vsel %vm312, %v844, 0
    %849 = vmatprep.subr.mxu0 0.0
    %850 = vmatpush1.xpose.msra.mxu0 %v847
    %851 = vmatprep.subr.mxu0 0.0
    %852 = vmatpush1.xpose.msra.mxu0 0.0
    %853 = vmatprep.subr.mxu0 0.0
    %854 = vmatpush1.xpose.msra.mxu0 0.0
    %855 = vmatprep.subr.mxu0 0.0
    %856 = vmatpush1.xpose.msra.mxu0 0.0
    %857 = vmatprep.subr.mxu0 0.0
    %858 = vmatpush1.xpose.msra.mxu0 0.0
    %859 = vmatprep.subr.mxu0 0.0
    %860 = vmatpush1.xpose.msra.mxu0 0.0
    %861 = vmatprep.subr.mxu0 0.0
    %862 = vmatpush1.xpose.msra.mxu0 0.0
    %863 = vmatprep.subr.mxu0 0.0
    %864 = vmatpush1.xpose.msra.mxu0 0.0
    %865 = vmatprep.subr.mxu0 0.0
    %866 = vmatpush1.xpose.msra.mxu0 0.0
    %867 = vmatprep.subr.mxu0 0.0
    %868 = vmatpush1.xpose.msra.mxu0 0.0
    %869 = vmatprep.subr.mxu0 0.0
    %870 = vmatpush1.xpose.msra.mxu0 0.0
    %871 = vmatprep.subr.mxu0 0.0
    %872 = vmatpush1.xpose.msra.mxu0 0.0
    %873 = vmatprep.subr.mxu0 0.0
    %874 = vmatpush1.xpose.msra.mxu0 0.0
    %875 = vmatprep.subr.mxu0 0.0
    %876 = vmatpush1.xpose.msra.mxu0 0.0
    %877 = vmatprep.subr.mxu0 0.0
    %878 = vmatpush1.xpose.msra.mxu0 0.0
    %879 = vmatprep.subr.mxu0 0.0
    %880 = vmatpush1.xpose.msra.mxu0 0.0
    %881 = vmatprep.subr.mxu0 0.0
    %882 = vmatpush1.xpose.msra.mxu0 0.0
    %883 = vmatprep.subr.mxu0 0.0
    %884 = vmatpush1.xpose.msra.mxu0 0.0
    %885 = vmatprep.subr.mxu0 0.0
    %886 = vmatpush1.xpose.msra.mxu0 0.0
    %887 = vmatprep.subr.mxu0 0.0
    %888 = vmatpush1.xpose.msra.mxu0 0.0
    %889 = vmatprep.subr.mxu0 0.0
    %890 = vmatpush1.xpose.msra.mxu0 0.0
    %891 = vmatprep.subr.mxu0 0.0
    %892 = vmatpush1.xpose.msra.mxu0 0.0
    %893 = vmatprep.subr.mxu0 0.0
    %894 = vmatpush1.xpose.msra.mxu0 0.0
    %895 = vmatprep.subr.mxu0 0.0
    %896 = vmatpush1.xpose.msra.mxu0 0.0
    %897 = vmatprep.subr.mxu0 0.0
    %898 = vmatpush1.xpose.msra.mxu0 0.0
    %899 = vmatprep.subr.mxu0 0.0
    %900 = vmatpush1.xpose.msra.mxu0 0.0
    %901 = vmatprep.subr.mxu0 0.0
    %902 = vmatpush1.xpose.msra.mxu0 0.0
    %903 = vmatprep.subr.mxu0 0.0
    %904 = vmatpush1.xpose.msra.mxu0 0.0
    %905 = vmatprep.subr.mxu0 0.0
    %906 = vmatpush1.xpose.msra.mxu0 0.0
    %907 = vmatprep.subr.mxu0 0.0
    %908 = vmatpush1.xpose.msra.mxu0 0.0
    %909 = vmatprep.subr.mxu0 0.0
    %910 = vmatpush1.xpose.msra.mxu0 0.0
    %911 = vmatprep.subr.mxu0 0.0
    %912 = vmatpush1.xpose.msra.mxu0 0.0
    %913 = vmatprep.mubr.f32.mxu0 0.0
    %914 = vmatmul.mubr.f32.gmra.mrb[0].mxu0 %v845
    %v915 = vpop.f32.mrb[0].mxu0
    %v916 = vadd.f32 0.0, %v915
    %v917 = vpop.f32.mrb[0].mxu0
    %918 = vdwg.mxu0
    %v919 = vmul.f32 %v384, 0.17677669
    %v920 = vmul.f32 %v460, 0.17677669
    %v921 = vmul.f32 %v536, 0.17677669
    %v922 = vmul.f32 %v612, 0.17677669
    %v923 = vmul.f32 %v688, 0.17677669
    %v924 = vmul.f32 %v764, 0.17677669
    %v925 = vmul.f32 %v840, 0.17677669
    %v926 = vmul.f32 %v916, 0.17677669
    %v927 = vlaneseq
    %v928 = vshrl.u32 %v927, 7
    %vm929 = vcmp.gt.s32.totalorder %v81, %v928
    %v930 = vsel %vm929, 1, 0
    %vm931 = vcmp.eq.s32.totalorder %v930, 1
    %v932 = vsel %vm931, -1e+30, %v919
    %v933 = vsel %vm931, -1e+30, %v920
    %v934 = vsel %vm931, -1e+30, %v921
    %v935 = vsel %vm931, -1e+30, %v922
    %v936 = vsel %vm931, -1e+30, %v923
    %v937 = vsel %vm931, -1e+30, %v924
    %v938 = vsel %vm931, -1e+30, %v925
    %v939 = vsel %vm931, -1e+30, %v926
    %v940 = vsel %vm312, %v932, -inf
    %941 = vmax.xlane.f32.xlu0 %v940
    %v942 = vpop.xlane.xlu0 %941
    %v943 = vsel %vm312, %v933, -inf
    %944 = vmax.xlane.f32.xlu0 %v943
    %v945 = vpop.xlane.xlu0 %944
    %v946 = vsel %vm312, %v934, -inf
    %947 = vmax.xlane.f32.xlu0 %v946
    %v948 = vpop.xlane.xlu0 %947
    %v949 = vsel %vm312, %v935, -inf
    %950 = vmax.xlane.f32.xlu0 %v949
    %v951 = vpop.xlane.xlu0 %950
    %v952 = vsel %vm312, %v936, -inf
    %953 = vmax.xlane.f32.xlu0 %v952
    %v954 = vpop.xlane.xlu0 %953
    %v955 = vsel %vm312, %v937, -inf
    %956 = vmax.xlane.f32.xlu0 %v955
    %v957 = vpop.xlane.xlu0 %956
    %v958 = vsel %vm312, %v938, -inf
    %959 = vmax.xlane.f32.xlu0 %v958
    %v960 = vpop.xlane.xlu0 %959
    %v961 = vsel %vm312, %v939, -inf
    %962 = vmax.xlane.f32.xlu0 %v961
    %v963 = vpop.xlane.xlu0 %962
    %v964 = vsub.f32 %v932, %v942
    %v965 = vsub.f32 %v933, %v945
    %v966 = vsub.f32 %v934, %v948
    %v967 = vsub.f32 %v935, %v951
    %v968 = vsub.f32 %v936, %v954
    %v969 = vsub.f32 %v937, %v957
    %v970 = vsub.f32 %v938, %v960
    %v971 = vsub.f32 %v939, %v963
    %v972 = vmul.f32 %v964, 1.442695
    %v973 = vpow.pop %v972
    %v974 = vmul.f32 %v965, 1.442695
    %v975 = vpow.pop %v974
    %v976 = vmul.f32 %v966, 1.442695
    %v977 = vpow.pop %v976
    %v978 = vmul.f32 %v967, 1.442695
    %v979 = vpow.pop %v978
    %v980 = vmul.f32 %v968, 1.442695
    %v981 = vpow.pop %v980
    %v982 = vmul.f32 %v969, 1.442695
    %v983 = vpow.pop %v982
    %v984 = vmul.f32 %v970, 1.442695
    %v985 = vpow.pop %v984
    %v986 = vmul.f32 %v971, 1.442695
    %v987 = vpow.pop %v986
    %v988 = vsel %vm312, %v973, 0.0
    %989 = vadd.xlane.f32.xlu0 %v988
    %v990 = vpop.xlane.xlu0 %989
    %v991 = vsel %vm312, %v975, 0.0
    %992 = vadd.xlane.f32.xlu0 %v991
    %v993 = vpop.xlane.xlu0 %992
    %v994 = vsel %vm312, %v977, 0.0
    %995 = vadd.xlane.f32.xlu0 %v994
    %v996 = vpop.xlane.xlu0 %995
    %v997 = vsel %vm312, %v979, 0.0
    %998 = vadd.xlane.f32.xlu0 %v997
    %v999 = vpop.xlane.xlu0 %998
    %v1000 = vsel %vm312, %v981, 0.0
    %1001 = vadd.xlane.f32.xlu0 %v1000
    %v1002 = vpop.xlane.xlu0 %1001
    %v1003 = vsel %vm312, %v983, 0.0
    %1004 = vadd.xlane.f32.xlu0 %v1003
    %v1005 = vpop.xlane.xlu0 %1004
    %v1006 = vsel %vm312, %v985, 0.0
    %1007 = vadd.xlane.f32.xlu0 %v1006
    %v1008 = vpop.xlane.xlu0 %1007
    %v1009 = vsel %vm312, %v987, 0.0
    %1010 = vadd.xlane.f32.xlu0 %v1009
    %v1011 = vpop.xlane.xlu0 %1010
    %v1012 = vrcp.pop %v990
    %v1013 = vmul.f32 %v973, %v1012
    %v1014 = vrcp.pop %v993
    %v1015 = vmul.f32 %v975, %v1014
    %v1016 = vrcp.pop %v996
    %v1017 = vmul.f32 %v977, %v1016
    %v1018 = vrcp.pop %v999
    %v1019 = vmul.f32 %v979, %v1018
    %v1020 = vrcp.pop %v1002
    %v1021 = vmul.f32 %v981, %v1020
    %v1022 = vrcp.pop %v1005
    %v1023 = vmul.f32 %v983, %v1022
    %v1024 = vrcp.pop %v1008
    %v1025 = vmul.f32 %v985, %v1024
    %v1026 = vrcp.pop %v1011
    %v1027 = vmul.f32 %v987, %v1026
    %1028 = vrot.lane.b32.xlu0 %v288, 64
    %v1029 = vpop.permute.xlu0 %1028
    %v1032 = vsel %vm312, %v1013, 0
    %1034 = vmatprep.subr.mxu0 0.0
    %1035 = vmatpush1.msra.mxu0 %v1029
    %1036 = vmatprep.subr.mxu0 0.0
    %1037 = vmatpush1.msra.mxu0 0.0
    %1038 = vmatprep.subr.mxu0 0.0
    %1039 = vmatpush1.msra.mxu0 0.0
    %1040 = vmatprep.subr.mxu0 0.0
    %1041 = vmatpush1.msra.mxu0 0.0
    %1042 = vmatprep.subr.mxu0 0.0
    %1043 = vmatpush1.msra.mxu0 0.0
    %1044 = vmatprep.subr.mxu0 0.0
    %1045 = vmatpush1.msra.mxu0 0.0
    %1046 = vmatprep.subr.mxu0 0.0
    %1047 = vmatpush1.msra.mxu0 0.0
    %1048 = vmatprep.subr.mxu0 0.0
    %1049 = vmatpush1.msra.mxu0 0.0
    %1050 = vmatprep.subr.mxu0 0.0
    %1051 = vmatpush1.msra.mxu0 0.0
    %1052 = vmatprep.subr.mxu0 0.0
    %1053 = vmatpush1.msra.mxu0 0.0
    %1054 = vmatprep.subr.mxu0 0.0
    %1055 = vmatpush1.msra.mxu0 0.0
    %1056 = vmatprep.subr.mxu0 0.0
    %1057 = vmatpush1.msra.mxu0 0.0
    %1058 = vmatprep.subr.mxu0 0.0
    %1059 = vmatpush1.msra.mxu0 0.0
    %1060 = vmatprep.subr.mxu0 0.0
    %1061 = vmatpush1.msra.mxu0 0.0
    %1062 = vmatprep.subr.mxu0 0.0
    %1063 = vmatpush1.msra.mxu0 0.0
    %1064 = vmatprep.subr.mxu0 0.0
    %1065 = vmatpush1.msra.mxu0 0.0
    %1066 = vmatprep.subr.mxu0 0.0
    %1067 = vmatpush1.msra.mxu0 0.0
    %1068 = vmatprep.subr.mxu0 0.0
    %1069 = vmatpush1.msra.mxu0 0.0
    %1070 = vmatprep.subr.mxu0 0.0
    %1071 = vmatpush1.msra.mxu0 0.0
    %1072 = vmatprep.subr.mxu0 0.0
    %1073 = vmatpush1.msra.mxu0 0.0
    %1074 = vmatprep.subr.mxu0 0.0
    %1075 = vmatpush1.msra.mxu0 0.0
    %1076 = vmatprep.subr.mxu0 0.0
    %1077 = vmatpush1.msra.mxu0 0.0
    %1078 = vmatprep.subr.mxu0 0.0
    %1079 = vmatpush1.msra.mxu0 0.0
    %1080 = vmatprep.subr.mxu0 0.0
    %1081 = vmatpush1.msra.mxu0 0.0
    %1082 = vmatprep.subr.mxu0 0.0
    %1083 = vmatpush1.msra.mxu0 0.0
    %1084 = vmatprep.subr.mxu0 0.0
    %1085 = vmatpush1.msra.mxu0 0.0
    %1086 = vmatprep.subr.mxu0 0.0
    %1087 = vmatpush1.msra.mxu0 0.0
    %1088 = vmatprep.subr.mxu0 0.0
    %1089 = vmatpush1.msra.mxu0 0.0
    %1090 = vmatprep.subr.mxu0 0.0
    %1091 = vmatpush1.msra.mxu0 0.0
    %1092 = vmatprep.subr.mxu0 0.0
    %1093 = vmatpush1.msra.mxu0 0.0
    %1094 = vmatprep.subr.mxu0 0.0
    %1095 = vmatpush1.msra.mxu0 0.0
    %1096 = vmatprep.subr.mxu0 0.0
    %1097 = vmatpush1.msra.mxu0 0.0
    %1098 = vmatprep.mubr.f32.mxu0 0.0
    %1099 = vmatmul.mubr.f32.gmra.mrb[0].mxu0 %v1032
    %v1100 = vpop.f32.mrb[0].mxu0
    %v1101 = vadd.f32 0.0, %v1100
    %v1102 = vpop.f32.mrb[0].mxu0
    %1103 = vdwg.mxu0
    %1104 = vrot.lane.b32.xlu0 %v293, 64
    %v1105 = vpop.permute.xlu0 %1104
    %v1108 = vsel %vm312, %v1015, 0
    %1110 = vmatprep.subr.mxu0 0.0
    %1111 = vmatpush1.msra.mxu0 %v1105
    %1112 = vmatprep.subr.mxu0 0.0
    %1113 = vmatpush1.msra.mxu0 0.0
    %1114 = vmatprep.subr.mxu0 0.0
    %1115 = vmatpush1.msra.mxu0 0.0
    %1116 = vmatprep.subr.mxu0 0.0
    %1117 = vmatpush1.msra.mxu0 0.0
    %1118 = vmatprep.subr.mxu0 0.0
    %1119 = vmatpush1.msra.mxu0 0.0
    %1120 = vmatprep.subr.mxu0 0.0
    %1121 = vmatpush1.msra.mxu0 0.0
    %1122 = vmatprep.subr.mxu0 0.0
    %1123 = vmatpush1.msra.mxu0 0.0
    %1124 = vmatprep.subr.mxu0 0.0
    %1125 = vmatpush1.msra.mxu0 0.0
    %1126 = vmatprep.subr.mxu0 0.0
    %1127 = vmatpush1.msra.mxu0 0.0
    %1128 = vmatprep.subr.mxu0 0.0
    %1129 = vmatpush1.msra.mxu0 0.0
    %1130 = vmatprep.subr.mxu0 0.0
    %1131 = vmatpush1.msra.mxu0 0.0
    %1132 = vmatprep.subr.mxu0 0.0
    %1133 = vmatpush1.msra.mxu0 0.0
    %1134 = vmatprep.subr.mxu0 0.0
    %1135 = vmatpush1.msra.mxu0 0.0
    %1136 = vmatprep.subr.mxu0 0.0
    %1137 = vmatpush1.msra.mxu0 0.0
    %1138 = vmatprep.subr.mxu0 0.0
    %1139 = vmatpush1.msra.mxu0 0.0
    %1140 = vmatprep.subr.mxu0 0.0
    %1141 = vmatpush1.msra.mxu0 0.0
    %1142 = vmatprep.subr.mxu0 0.0
    %1143 = vmatpush1.msra.mxu0 0.0
    %1144 = vmatprep.subr.mxu0 0.0
    %1145 = vmatpush1.msra.mxu0 0.0
    %1146 = vmatprep.subr.mxu0 0.0
    %1147 = vmatpush1.msra.mxu0 0.0
    %1148 = vmatprep.subr.mxu0 0.0
    %1149 = vmatpush1.msra.mxu0 0.0
    %1150 = vmatprep.subr.mxu0 0.0
    %1151 = vmatpush1.msra.mxu0 0.0
    %1152 = vmatprep.subr.mxu0 0.0
    %1153 = vmatpush1.msra.mxu0 0.0
    %1154 = vmatprep.subr.mxu0 0.0
    %1155 = vmatpush1.msra.mxu0 0.0
    %1156 = vmatprep.subr.mxu0 0.0
    %1157 = vmatpush1.msra.mxu0 0.0
    %1158 = vmatprep.subr.mxu0 0.0
    %1159 = vmatpush1.msra.mxu0 0.0
    %1160 = vmatprep.subr.mxu0 0.0
    %1161 = vmatpush1.msra.mxu0 0.0
    %1162 = vmatprep.subr.mxu0 0.0
    %1163 = vmatpush1.msra.mxu0 0.0
    %1164 = vmatprep.subr.mxu0 0.0
    %1165 = vmatpush1.msra.mxu0 0.0
    %1166 = vmatprep.subr.mxu0 0.0
    %1167 = vmatpush1.msra.mxu0 0.0
    %1168 = vmatprep.subr.mxu0 0.0
    %1169 = vmatpush1.msra.mxu0 0.0
    %1170 = vmatprep.subr.mxu0 0.0
    %1171 = vmatpush1.msra.mxu0 0.0
    %1172 = vmatprep.subr.mxu0 0.0
    %1173 = vmatpush1.msra.mxu0 0.0
    %1174 = vmatprep.mubr.f32.mxu0 0.0
    %1175 = vmatmul.mubr.f32.gmra.mrb[0].mxu0 %v1108
    %v1176 = vpop.f32.mrb[0].mxu0
    %v1177 = vadd.f32 0.0, %v1176
    %v1178 = vpop.f32.mrb[0].mxu0
    %1179 = vdwg.mxu0
    %1180 = vrot.lane.b32.xlu0 %v299, 64
    %v1181 = vpop.permute.xlu0 %1180
    %v1184 = vsel %vm312, %v1017, 0
    %1186 = vmatprep.subr.mxu0 0.0
    %1187 = vmatpush1.msra.mxu0 %v1181
    %1188 = vmatprep.subr.mxu0 0.0
    %1189 = vmatpush1.msra.mxu0 0.0
    %1190 = vmatprep.subr.mxu0 0.0
    %1191 = vmatpush1.msra.mxu0 0.0
    %1192 = vmatprep.subr.mxu0 0.0
    %1193 = vmatpush1.msra.mxu0 0.0
    %1194 = vmatprep.subr.mxu0 0.0
    %1195 = vmatpush1.msra.mxu0 0.0
    %1196 = vmatprep.subr.mxu0 0.0
    %1197 = vmatpush1.msra.mxu0 0.0
    %1198 = vmatprep.subr.mxu0 0.0
    %1199 = vmatpush1.msra.mxu0 0.0
    %1200 = vmatprep.subr.mxu0 0.0
    %1201 = vmatpush1.msra.mxu0 0.0
    %1202 = vmatprep.subr.mxu0 0.0
    %1203 = vmatpush1.msra.mxu0 0.0
    %1204 = vmatprep.subr.mxu0 0.0
    %1205 = vmatpush1.msra.mxu0 0.0
    %1206 = vmatprep.subr.mxu0 0.0
    %1207 = vmatpush1.msra.mxu0 0.0
    %1208 = vmatprep.subr.mxu0 0.0
    %1209 = vmatpush1.msra.mxu0 0.0
    %1210 = vmatprep.subr.mxu0 0.0
    %1211 = vmatpush1.msra.mxu0 0.0
    %1212 = vmatprep.subr.mxu0 0.0
    %1213 = vmatpush1.msra.mxu0 0.0
    %1214 = vmatprep.subr.mxu0 0.0
    %1215 = vmatpush1.msra.mxu0 0.0
    %1216 = vmatprep.subr.mxu0 0.0
    %1217 = vmatpush1.msra.mxu0 0.0
    %1218 = vmatprep.subr.mxu0 0.0
    %1219 = vmatpush1.msra.mxu0 0.0
    %1220 = vmatprep.subr.mxu0 0.0
    %1221 = vmatpush1.msra.mxu0 0.0
    %1222 = vmatprep.subr.mxu0 0.0
    %1223 = vmatpush1.msra.mxu0 0.0
    %1224 = vmatprep.subr.mxu0 0.0
    %1225 = vmatpush1.msra.mxu0 0.0
    %1226 = vmatprep.subr.mxu0 0.0
    %1227 = vmatpush1.msra.mxu0 0.0
    %1228 = vmatprep.subr.mxu0 0.0
    %1229 = vmatpush1.msra.mxu0 0.0
    %1230 = vmatprep.subr.mxu0 0.0
    %1231 = vmatpush1.msra.mxu0 0.0
    %1232 = vmatprep.subr.mxu0 0.0
    %1233 = vmatpush1.msra.mxu0 0.0
    %1234 = vmatprep.subr.mxu0 0.0
    %1235 = vmatpush1.msra.mxu0 0.0
    %1236 = vmatprep.subr.mxu0 0.0
    %1237 = vmatpush1.msra.mxu0 0.0
    %1238 = vmatprep.subr.mxu0 0.0
    %1239 = vmatpush1.msra.mxu0 0.0
    %1240 = vmatprep.subr.mxu0 0.0
    %1241 = vmatpush1.msra.mxu0 0.0
    %1242 = vmatprep.subr.mxu0 0.0
    %1243 = vmatpush1.msra.mxu0 0.0
    %1244 = vmatprep.subr.mxu0 0.0
    %1245 = vmatpush1.msra.mxu0 0.0
    %1246 = vmatprep.subr.mxu0 0.0
    %1247 = vmatpush1.msra.mxu0 0.0
    %1248 = vmatprep.subr.mxu0 0.0
    %1249 = vmatpush1.msra.mxu0 0.0
    %1250 = vmatprep.mubr.f32.mxu0 0.0
    %1251 = vmatmul.mubr.f32.gmra.mrb[0].mxu0 %v1184
    %v1252 = vpop.f32.mrb[0].mxu0
    %v1253 = vadd.f32 0.0, %v1252
    %v1254 = vpop.f32.mrb[0].mxu0
    %1255 = vdwg.mxu0
    %1256 = vrot.lane.b32.xlu0 %v301, 64
    %v1257 = vpop.permute.xlu0 %1256
    %v1260 = vsel %vm312, %v1019, 0
    %1262 = vmatprep.subr.mxu0 0.0
    %1263 = vmatpush1.msra.mxu0 %v1257
    %1264 = vmatprep.subr.mxu0 0.0
    %1265 = vmatpush1.msra.mxu0 0.0
    %1266 = vmatprep.subr.mxu0 0.0
    %1267 = vmatpush1.msra.mxu0 0.0
    %1268 = vmatprep.subr.mxu0 0.0
    %1269 = vmatpush1.msra.mxu0 0.0
    %1270 = vmatprep.subr.mxu0 0.0
    %1271 = vmatpush1.msra.mxu0 0.0
    %1272 = vmatprep.subr.mxu0 0.0
    %1273 = vmatpush1.msra.mxu0 0.0
    %1274 = vmatprep.subr.mxu0 0.0
    %1275 = vmatpush1.msra.mxu0 0.0
    %1276 = vmatprep.subr.mxu0 0.0
    %1277 = vmatpush1.msra.mxu0 0.0
    %1278 = vmatprep.subr.mxu0 0.0
    %1279 = vmatpush1.msra.mxu0 0.0
    %1280 = vmatprep.subr.mxu0 0.0
    %1281 = vmatpush1.msra.mxu0 0.0
    %1282 = vmatprep.subr.mxu0 0.0
    %1283 = vmatpush1.msra.mxu0 0.0
    %1284 = vmatprep.subr.mxu0 0.0
    %1285 = vmatpush1.msra.mxu0 0.0
    %1286 = vmatprep.subr.mxu0 0.0
    %1287 = vmatpush1.msra.mxu0 0.0
    %1288 = vmatprep.subr.mxu0 0.0
    %1289 = vmatpush1.msra.mxu0 0.0
    %1290 = vmatprep.subr.mxu0 0.0
    %1291 = vmatpush1.msra.mxu0 0.0
    %1292 = vmatprep.subr.mxu0 0.0
    %1293 = vmatpush1.msra.mxu0 0.0
    %1294 = vmatprep.subr.mxu0 0.0
    %1295 = vmatpush1.msra.mxu0 0.0
    %1296 = vmatprep.subr.mxu0 0.0
    %1297 = vmatpush1.msra.mxu0 0.0
    %1298 = vmatprep.subr.mxu0 0.0
    %1299 = vmatpush1.msra.mxu0 0.0
    %1300 = vmatprep.subr.mxu0 0.0
    %1301 = vmatpush1.msra.mxu0 0.0
    %1302 = vmatprep.subr.mxu0 0.0
    %1303 = vmatpush1.msra.mxu0 0.0
    %1304 = vmatprep.subr.mxu0 0.0
    %1305 = vmatpush1.msra.mxu0 0.0
    %1306 = vmatprep.subr.mxu0 0.0
    %1307 = vmatpush1.msra.mxu0 0.0
    %1308 = vmatprep.subr.mxu0 0.0
    %1309 = vmatpush1.msra.mxu0 0.0
    %1310 = vmatprep.subr.mxu0 0.0
    %1311 = vmatpush1.msra.mxu0 0.0
    %1312 = vmatprep.subr.mxu0 0.0
    %1313 = vmatpush1.msra.mxu0 0.0
    %1314 = vmatprep.subr.mxu0 0.0
    %1315 = vmatpush1.msra.mxu0 0.0
    %1316 = vmatprep.subr.mxu0 0.0
    %1317 = vmatpush1.msra.mxu0 0.0
    %1318 = vmatprep.subr.mxu0 0.0
    %1319 = vmatpush1.msra.mxu0 0.0
    %1320 = vmatprep.subr.mxu0 0.0
    %1321 = vmatpush1.msra.mxu0 0.0
    %1322 = vmatprep.subr.mxu0 0.0
    %1323 = vmatpush1.msra.mxu0 0.0
    %1324 = vmatprep.subr.mxu0 0.0
    %1325 = vmatpush1.msra.mxu0 0.0
    %1326 = vmatprep.mubr.f32.mxu0 0.0
    %1327 = vmatmul.mubr.f32.gmra.mrb[0].mxu0 %v1260
    %v1328 = vpop.f32.mrb[0].mxu0
    %v1329 = vadd.f32 0.0, %v1328
    %v1330 = vpop.f32.mrb[0].mxu0
    %1331 = vdwg.mxu0
    %1332 = vrot.lane.b32.xlu0 %v303, 64
    %v1333 = vpop.permute.xlu0 %1332
    %v1336 = vsel %vm312, %v1021, 0
    %1338 = vmatprep.subr.mxu0 0.0
    %1339 = vmatpush1.msra.mxu0 %v1333
    %1340 = vmatprep.subr.mxu0 0.0
    %1341 = vmatpush1.msra.mxu0 0.0
    %1342 = vmatprep.subr.mxu0 0.0
    %1343 = vmatpush1.msra.mxu0 0.0
    %1344 = vmatprep.subr.mxu0 0.0
    %1345 = vmatpush1.msra.mxu0 0.0
    %1346 = vmatprep.subr.mxu0 0.0
    %1347 = vmatpush1.msra.mxu0 0.0
    %1348 = vmatprep.subr.mxu0 0.0
    %1349 = vmatpush1.msra.mxu0 0.0
    %1350 = vmatprep.subr.mxu0 0.0
    %1351 = vmatpush1.msra.mxu0 0.0
    %1352 = vmatprep.subr.mxu0 0.0
    %1353 = vmatpush1.msra.mxu0 0.0
    %1354 = vmatprep.subr.mxu0 0.0
    %1355 = vmatpush1.msra.mxu0 0.0
    %1356 = vmatprep.subr.mxu0 0.0
    %1357 = vmatpush1.msra.mxu0 0.0
    %1358 = vmatprep.subr.mxu0 0.0
    %1359 = vmatpush1.msra.mxu0 0.0
    %1360 = vmatprep.subr.mxu0 0.0
    %1361 = vmatpush1.msra.mxu0 0.0
    %1362 = vmatprep.subr.mxu0 0.0
    %1363 = vmatpush1.msra.mxu0 0.0
    %1364 = vmatprep.subr.mxu0 0.0
    %1365 = vmatpush1.msra.mxu0 0.0
    %1366 = vmatprep.subr.mxu0 0.0
    %1367 = vmatpush1.msra.mxu0 0.0
    %1368 = vmatprep.subr.mxu0 0.0
    %1369 = vmatpush1.msra.mxu0 0.0
    %1370 = vmatprep.subr.mxu0 0.0
    %1371 = vmatpush1.msra.mxu0 0.0
    %1372 = vmatprep.subr.mxu0 0.0
    %1373 = vmatpush1.msra.mxu0 0.0
    %1374 = vmatprep.subr.mxu0 0.0
    %1375 = vmatpush1.msra.mxu0 0.0
    %1376 = vmatprep.subr.mxu0 0.0
    %1377 = vmatpush1.msra.mxu0 0.0
    %1378 = vmatprep.subr.mxu0 0.0
    %1379 = vmatpush1.msra.mxu0 0.0
    %1380 = vmatprep.subr.mxu0 0.0
    %1381 = vmatpush1.msra.mxu0 0.0
    %1382 = vmatprep.subr.mxu0 0.0
    %1383 = vmatpush1.msra.mxu0 0.0
    %1384 = vmatprep.subr.mxu0 0.0
    %1385 = vmatpush1.msra.mxu0 0.0
    %1386 = vmatprep.subr.mxu0 0.0
    %1387 = vmatpush1.msra.mxu0 0.0
    %1388 = vmatprep.subr.mxu0 0.0
    %1389 = vmatpush1.msra.mxu0 0.0
    %1390 = vmatprep.subr.mxu0 0.0
    %1391 = vmatpush1.msra.mxu0 0.0
    %1392 = vmatprep.subr.mxu0 0.0
    %1393 = vmatpush1.msra.mxu0 0.0
    %1394 = vmatprep.subr.mxu0 0.0
    %1395 = vmatpush1.msra.mxu0 0.0
    %1396 = vmatprep.subr.mxu0 0.0
    %1397 = vmatpush1.msra.mxu0 0.0
    %1398 = vmatprep.subr.mxu0 0.0
    %1399 = vmatpush1.msra.mxu0 0.0
    %1400 = vmatprep.subr.mxu0 0.0
    %1401 = vmatpush1.msra.mxu0 0.0
    %1402 = vmatprep.mubr.f32.mxu0 0.0
    %1403 = vmatmul.mubr.f32.gmra.mrb[0].mxu0 %v1336
    %v1404 = vpop.f32.mrb[0].mxu0
    %v1405 = vadd.f32 0.0, %v1404
    %v1406 = vpop.f32.mrb[0].mxu0
    %1407 = vdwg.mxu0
    %1408 = vrot.lane.b32.xlu0 %v305, 64
    %v1409 = vpop.permute.xlu0 %1408
    %v1412 = vsel %vm312, %v1023, 0
    %1414 = vmatprep.subr.mxu0 0.0
    %1415 = vmatpush1.msra.mxu0 %v1409
    %1416 = vmatprep.subr.mxu0 0.0
    %1417 = vmatpush1.msra.mxu0 0.0
    %1418 = vmatprep.subr.mxu0 0.0
    %1419 = vmatpush1.msra.mxu0 0.0
    %1420 = vmatprep.subr.mxu0 0.0
    %1421 = vmatpush1.msra.mxu0 0.0
    %1422 = vmatprep.subr.mxu0 0.0
    %1423 = vmatpush1.msra.mxu0 0.0
    %1424 = vmatprep.subr.mxu0 0.0
    %1425 = vmatpush1.msra.mxu0 0.0
    %1426 = vmatprep.subr.mxu0 0.0
    %1427 = vmatpush1.msra.mxu0 0.0
    %1428 = vmatprep.subr.mxu0 0.0
    %1429 = vmatpush1.msra.mxu0 0.0
    %1430 = vmatprep.subr.mxu0 0.0
    %1431 = vmatpush1.msra.mxu0 0.0
    %1432 = vmatprep.subr.mxu0 0.0
    %1433 = vmatpush1.msra.mxu0 0.0
    %1434 = vmatprep.subr.mxu0 0.0
    %1435 = vmatpush1.msra.mxu0 0.0
    %1436 = vmatprep.subr.mxu0 0.0
    %1437 = vmatpush1.msra.mxu0 0.0
    %1438 = vmatprep.subr.mxu0 0.0
    %1439 = vmatpush1.msra.mxu0 0.0
    %1440 = vmatprep.subr.mxu0 0.0
    %1441 = vmatpush1.msra.mxu0 0.0
    %1442 = vmatprep.subr.mxu0 0.0
    %1443 = vmatpush1.msra.mxu0 0.0
    %1444 = vmatprep.subr.mxu0 0.0
    %1445 = vmatpush1.msra.mxu0 0.0
    %1446 = vmatprep.subr.mxu0 0.0
    %1447 = vmatpush1.msra.mxu0 0.0
    %1448 = vmatprep.subr.mxu0 0.0
    %1449 = vmatpush1.msra.mxu0 0.0
    %1450 = vmatprep.subr.mxu0 0.0
    %1451 = vmatpush1.msra.mxu0 0.0
    %1452 = vmatprep.subr.mxu0 0.0
    %1453 = vmatpush1.msra.mxu0 0.0
    %1454 = vmatprep.subr.mxu0 0.0
    %1455 = vmatpush1.msra.mxu0 0.0
    %1456 = vmatprep.subr.mxu0 0.0
    %1457 = vmatpush1.msra.mxu0 0.0
    %1458 = vmatprep.subr.mxu0 0.0
    %1459 = vmatpush1.msra.mxu0 0.0
    %1460 = vmatprep.subr.mxu0 0.0
    %1461 = vmatpush1.msra.mxu0 0.0
    %1462 = vmatprep.subr.mxu0 0.0
    %1463 = vmatpush1.msra.mxu0 0.0
    %1464 = vmatprep.subr.mxu0 0.0
    %1465 = vmatpush1.msra.mxu0 0.0
    %1466 = vmatprep.subr.mxu0 0.0
    %1467 = vmatpush1.msra.mxu0 0.0
    %1468 = vmatprep.subr.mxu0 0.0
    %1469 = vmatpush1.msra.mxu0 0.0
    %1470 = vmatprep.subr.mxu0 0.0
    %1471 = vmatpush1.msra.mxu0 0.0
    %1472 = vmatprep.subr.mxu0 0.0
    %1473 = vmatpush1.msra.mxu0 0.0
    %1474 = vmatprep.subr.mxu0 0.0
    %1475 = vmatpush1.msra.mxu0 0.0
    %1476 = vmatprep.subr.mxu0 0.0
    %1477 = vmatpush1.msra.mxu0 0.0
    %1478 = vmatprep.mubr.f32.mxu0 0.0
    %1479 = vmatmul.mubr.f32.gmra.mrb[0].mxu0 %v1412
    %v1480 = vpop.f32.mrb[0].mxu0
    %v1481 = vadd.f32 0.0, %v1480
    %v1482 = vpop.f32.mrb[0].mxu0
    %1483 = vdwg.mxu0
    %1484 = vrot.lane.b32.xlu0 %v307, 64
    %v1485 = vpop.permute.xlu0 %1484
    %v1488 = vsel %vm312, %v1025, 0
    %1490 = vmatprep.subr.mxu0 0.0
    %1491 = vmatpush1.msra.mxu0 %v1485
    %1492 = vmatprep.subr.mxu0 0.0
    %1493 = vmatpush1.msra.mxu0 0.0
    %1494 = vmatprep.subr.mxu0 0.0
    %1495 = vmatpush1.msra.mxu0 0.0
    %1496 = vmatprep.subr.mxu0 0.0
    %1497 = vmatpush1.msra.mxu0 0.0
    %1498 = vmatprep.subr.mxu0 0.0
    %1499 = vmatpush1.msra.mxu0 0.0
    %1500 = vmatprep.subr.mxu0 0.0
    %1501 = vmatpush1.msra.mxu0 0.0
    %1502 = vmatprep.subr.mxu0 0.0
    %1503 = vmatpush1.msra.mxu0 0.0
    %1504 = vmatprep.subr.mxu0 0.0
    %1505 = vmatpush1.msra.mxu0 0.0
    %1506 = vmatprep.subr.mxu0 0.0
    %1507 = vmatpush1.msra.mxu0 0.0
    %1508 = vmatprep.subr.mxu0 0.0
    %1509 = vmatpush1.msra.mxu0 0.0
    %1510 = vmatprep.subr.mxu0 0.0
    %1511 = vmatpush1.msra.mxu0 0.0
    %1512 = vmatprep.subr.mxu0 0.0
    %1513 = vmatpush1.msra.mxu0 0.0
    %1514 = vmatprep.subr.mxu0 0.0
    %1515 = vmatpush1.msra.mxu0 0.0
    %1516 = vmatprep.subr.mxu0 0.0
    %1517 = vmatpush1.msra.mxu0 0.0
    %1518 = vmatprep.subr.mxu0 0.0
    %1519 = vmatpush1.msra.mxu0 0.0
    %1520 = vmatprep.subr.mxu0 0.0
    %1521 = vmatpush1.msra.mxu0 0.0
    %1522 = vmatprep.subr.mxu0 0.0
    %1523 = vmatpush1.msra.mxu0 0.0
    %1524 = vmatprep.subr.mxu0 0.0
    %1525 = vmatpush1.msra.mxu0 0.0
    %1526 = vmatprep.subr.mxu0 0.0
    %1527 = vmatpush1.msra.mxu0 0.0
    %1528 = vmatprep.subr.mxu0 0.0
    %1529 = vmatpush1.msra.mxu0 0.0
    %1530 = vmatprep.subr.mxu0 0.0
    %1531 = vmatpush1.msra.mxu0 0.0
    %1532 = vmatprep.subr.mxu0 0.0
    %1533 = vmatpush1.msra.mxu0 0.0
    %1534 = vmatprep.subr.mxu0 0.0
    %1535 = vmatpush1.msra.mxu0 0.0
    %1536 = vmatprep.subr.mxu0 0.0
    %1537 = vmatpush1.msra.mxu0 0.0
    %1538 = vmatprep.subr.mxu0 0.0
    %1539 = vmatpush1.msra.mxu0 0.0
    %1540 = vmatprep.subr.mxu0 0.0
    %1541 = vmatpush1.msra.mxu0 0.0
    %1542 = vmatprep.subr.mxu0 0.0
    %1543 = vmatpush1.msra.mxu0 0.0
    %1544 = vmatprep.subr.mxu0 0.0
    %1545 = vmatpush1.msra.mxu0 0.0
    %1546 = vmatprep.subr.mxu0 0.0
    %1547 = vmatpush1.msra.mxu0 0.0
    %1548 = vmatprep.subr.mxu0 0.0
    %1549 = vmatpush1.msra.mxu0 0.0
    %1550 = vmatprep.subr.mxu0 0.0
    %1551 = vmatpush1.msra.mxu0 0.0
    %1552 = vmatprep.subr.mxu0 0.0
    %1553 = vmatpush1.msra.mxu0 0.0
    %1554 = vmatprep.mubr.f32.mxu0 0.0
    %1555 = vmatmul.mubr.f32.gmra.mrb[0].mxu0 %v1488
    %v1556 = vpop.f32.mrb[0].mxu0
    %v1557 = vadd.f32 0.0, %v1556
    %v1558 = vpop.f32.mrb[0].mxu0
    %1559 = vdwg.mxu0
    %1560 = vrot.lane.b32.xlu0 %v309, 64
    %v1561 = vpop.permute.xlu0 %1560
    %v1564 = vsel %vm312, %v1027, 0
    %1566 = vmatprep.subr.mxu0 0.0
    %1567 = vmatpush1.msra.mxu0 %v1561
    %1568 = vmatprep.subr.mxu0 0.0
    %1569 = vmatpush1.msra.mxu0 0.0
    %1570 = vmatprep.subr.mxu0 0.0
    %1571 = vmatpush1.msra.mxu0 0.0
    %1572 = vmatprep.subr.mxu0 0.0
    %1573 = vmatpush1.msra.mxu0 0.0
    %1574 = vmatprep.subr.mxu0 0.0
    %1575 = vmatpush1.msra.mxu0 0.0
    %1576 = vmatprep.subr.mxu0 0.0
    %1577 = vmatpush1.msra.mxu0 0.0
    %1578 = vmatprep.subr.mxu0 0.0
    %1579 = vmatpush1.msra.mxu0 0.0
    %1580 = vmatprep.subr.mxu0 0.0
    %1581 = vmatpush1.msra.mxu0 0.0
    %1582 = vmatprep.subr.mxu0 0.0
    %1583 = vmatpush1.msra.mxu0 0.0
    %1584 = vmatprep.subr.mxu0 0.0
    %1585 = vmatpush1.msra.mxu0 0.0
    %1586 = vmatprep.subr.mxu0 0.0
    %1587 = vmatpush1.msra.mxu0 0.0
    %1588 = vmatprep.subr.mxu0 0.0
    %1589 = vmatpush1.msra.mxu0 0.0
    %1590 = vmatprep.subr.mxu0 0.0
    %1591 = vmatpush1.msra.mxu0 0.0
    %1592 = vmatprep.subr.mxu0 0.0
    %1593 = vmatpush1.msra.mxu0 0.0
    %1594 = vmatprep.subr.mxu0 0.0
    %1595 = vmatpush1.msra.mxu0 0.0
    %1596 = vmatprep.subr.mxu0 0.0
    %1597 = vmatpush1.msra.mxu0 0.0
    %1598 = vmatprep.subr.mxu0 0.0
    %1599 = vmatpush1.msra.mxu0 0.0
    %1600 = vmatprep.subr.mxu0 0.0
    %1601 = vmatpush1.msra.mxu0 0.0
    %1602 = vmatprep.subr.mxu0 0.0
    %1603 = vmatpush1.msra.mxu0 0.0
    %1604 = vmatprep.subr.mxu0 0.0
    %1605 = vmatpush1.msra.mxu0 0.0
    %1606 = vmatprep.subr.mxu0 0.0
    %1607 = vmatpush1.msra.mxu0 0.0
    %1608 = vmatprep.subr.mxu0 0.0
    %1609 = vmatpush1.msra.mxu0 0.0
    %1610 = vmatprep.subr.mxu0 0.0
    %1611 = vmatpush1.msra.mxu0 0.0
    %1612 = vmatprep.subr.mxu0 0.0
    %1613 = vmatpush1.msra.mxu0 0.0
    %1614 = vmatprep.subr.mxu0 0.0
    %1615 = vmatpush1.msra.mxu0 0.0
    %1616 = vmatprep.subr.mxu0 0.0
    %1617 = vmatpush1.msra.mxu0 0.0
    %1618 = vmatprep.subr.mxu0 0.0
    %1619 = vmatpush1.msra.mxu0 0.0
    %1620 = vmatprep.subr.mxu0 0.0
    %1621 = vmatpush1.msra.mxu0 0.0
    %1622 = vmatprep.subr.mxu0 0.0
    %1623 = vmatpush1.msra.mxu0 0.0
    %1624 = vmatprep.subr.mxu0 0.0
    %1625 = vmatpush1.msra.mxu0 0.0
    %1626 = vmatprep.subr.mxu0 0.0
    %1627 = vmatpush1.msra.mxu0 0.0
    %1628 = vmatprep.subr.mxu0 0.0
    %1629 = vmatpush1.msra.mxu0 0.0
    %1630 = vmatprep.mubr.f32.mxu0 0.0
    %1631 = vmatmul.mubr.f32.gmra.mrb[0].mxu0 %v1564
    %v1632 = vpop.f32.mrb[0].mxu0
    %v1633 = vadd.f32 0.0, %v1632
    %v1634 = vpop.f32.mrb[0].mxu0
    %1635 = vdwg.mxu0
    %1638 = vrot.lane.b32.xlu0 %v1253, 8
    %v1639 = vpop.permute.xlu0 %1638
    %1640 = vrot.lane.b32.xlu0 %v1329, 8
    %v1641 = vpop.permute.xlu0 %1640
    %1646 = vrot.lane.b32.xlu0 %v1405, 16
    %v1647 = vpop.permute.xlu0 %1646
    %1648 = vrot.lane.b32.xlu0 %v1481, 16
    %v1649 = vpop.permute.xlu0 %1648
    %1654 = vrot.lane.b32.xlu0 %v1557, 24
    %v1655 = vpop.permute.xlu0 %1654
    %1656 = vrot.lane.b32.xlu0 %v1633, 24
    %v1657 = vpop.permute.xlu0 %1656
    %v1660 = vsel %vm312, %v1101, %v1639
    %v1661 = vsel %vm312, %v1177, %v1641
    %vm1662 = vcmask 130048
    %v1663 = vsel %vm1662, %v1660, %v1647
    %v1664 = vsel %vm1662, %v1661, %v1649
    %vm1665 = vcmask 195584
    %v1666 = vsel %vm1665, %v1663, %v1655
    %v1667 = vsel %vm1665, %v1664, %v1657
    %v1668 = vadd.f32 %v173, %v1666
    %v1669 = vadd.f32 %v174, %v1667
    %v1670 = vsel %vm175, %v1668, 0.0
    %1671 = vadd.xlane.f32.xlu0 %v1670
    %v1672 = vpop.xlane.xlu0 %1671
    %v1673 = vsel %vm175, %v1669, 0.0
    %1674 = vadd.xlane.f32.xlu0 %v1673
    %v1675 = vpop.xlane.xlu0 %1674
    %v1676 = vmul.f32 %v1672, %v182
    %v1677 = vmul.f32 %v1675, %v182
    %v1678 = vsub.f32 %v1668, %v1676
    %v1679 = vsub.f32 %v1669, %v1677
    %v1680 = vmul.f32 %v1678, %v1678
    %v1681 = vmul.f32 %v1679, %v1679
    %v1682 = vsel %vm175, %v1680, 0.0
    %1683 = vadd.xlane.f32.xlu0 %v1682
    %v1684 = vpop.xlane.xlu0 %1683
    %v1685 = vsel %vm175, %v1681, 0.0
    %1686 = vadd.xlane.f32.xlu0 %v1685
    %v1687 = vpop.xlane.xlu0 %1686
    %v1688 = vmul.f32 %v1684, %v182
    %v1689 = vmul.f32 %v1687, %v182
    %v1690 = vadd.f32 %v1688, 1e-05
    %v1691 = vadd.f32 %v1689, 1e-05
    %v1692 = vrsqrt.pop %v1690
    %v1693 = vrsqrt.pop %v1691
    %v1694 = vmul.f32 %v1678, %v1692
    %v1695 = vmul.f32 %v1679, %v1693
    %v1696 = vlaneseq
    %v1697 = vshrl.u32 %v1696, 7
    %v1698 = vsub.s32 0, %v1697
    %v1699 = vrot.slane %v75, %v1698
    %v1700 = vmul.f32 %v1694, %v1699
    %v1701 = vmul.f32 %v1695, %v1699
    %v1702 = vlaneseq
    %v1703 = vshrl.u32 %v1702, 7
    %v1704 = vsub.s32 0, %v1703
    %v1705 = vrot.slane %v76, %v1704
    %v1706 = vadd.f32 %v1700, %v1705
    %v1707 = vadd.f32 %v1701, %v1705
    %v1708 = vlaneseq
    %v1709 = vshrl.u32 %v1708, 7
    %v1710 = vsub.s32 0, %v1709
    %v1711 = vrot.slane %v77, %v1710
    %v1713 = vsel %vm175, %v1706, 0
    %v1716 = vsel %vm175, %v1707, 0
    %1718 = vmatprep.subr.mxu0 0.0
    %1719 = vmatpush1.msra.mxu0 %v49
    %1720 = vmatprep.subr.mxu0 0.0
    %1721 = vmatpush1.msra.mxu0 %v50
    %1722 = vmatprep.subr.mxu0 0.0
    %1723 = vmatpush1.msra.mxu0 %v51
    %1724 = vmatprep.subr.mxu0 0.0
    %1725 = vmatpush1.msra.mxu0 %v52
    %1726 = vmatprep.subr.mxu0 0.0
    %1727 = vmatpush1.msra.mxu0 0.0
    %1728 = vmatprep.subr.mxu0 0.0
    %1729 = vmatpush1.msra.mxu0 0.0
    %1730 = vmatprep.subr.mxu0 0.0
    %1731 = vmatpush1.msra.mxu0 0.0
    %1732 = vmatprep.subr.mxu0 0.0
    %1733 = vmatpush1.msra.mxu0 0.0
    %1734 = vmatprep.subr.mxu0 0.0
    %1735 = vmatpush1.msra.mxu0 0.0
    %1736 = vmatprep.subr.mxu0 0.0
    %1737 = vmatpush1.msra.mxu0 0.0
    %1738 = vmatprep.subr.mxu0 0.0
    %1739 = vmatpush1.msra.mxu0 0.0
    %1740 = vmatprep.subr.mxu0 0.0
    %1741 = vmatpush1.msra.mxu0 0.0
    %1742 = vmatprep.subr.mxu0 0.0
    %1743 = vmatpush1.msra.mxu0 0.0
    %1744 = vmatprep.subr.mxu0 0.0
    %1745 = vmatpush1.msra.mxu0 0.0
    %1746 = vmatprep.subr.mxu0 0.0
    %1747 = vmatpush1.msra.mxu0 0.0
    %1748 = vmatprep.subr.mxu0 0.0
    %1749 = vmatpush1.msra.mxu0 0.0
    %1750 = vmatprep.subr.mxu0 0.0
    %1751 = vmatpush1.msra.mxu0 0.0
    %1752 = vmatprep.subr.mxu0 0.0
    %1753 = vmatpush1.msra.mxu0 0.0
    %1754 = vmatprep.subr.mxu0 0.0
    %1755 = vmatpush1.msra.mxu0 0.0
    %1756 = vmatprep.subr.mxu0 0.0
    %1757 = vmatpush1.msra.mxu0 0.0
    %1758 = vmatprep.subr.mxu0 0.0
    %1759 = vmatpush1.msra.mxu0 0.0
    %1760 = vmatprep.subr.mxu0 0.0
    %1761 = vmatpush1.msra.mxu0 0.0
    %1762 = vmatprep.subr.mxu0 0.0
    %1763 = vmatpush1.msra.mxu0 0.0
    %1764 = vmatprep.subr.mxu0 0.0
    %1765 = vmatpush1.msra.mxu0 0.0
    %1766 = vmatprep.subr.mxu0 0.0
    %1767 = vmatpush1.msra.mxu0 0.0
    %1768 = vmatprep.subr.mxu0 0.0
    %1769 = vmatpush1.msra.mxu0 0.0
    %1770 = vmatprep.subr.mxu0 0.0
    %1771 = vmatpush1.msra.mxu0 0.0
    %1772 = vmatprep.subr.mxu0 0.0
    %1773 = vmatpush1.msra.mxu0 0.0
    %1774 = vmatprep.subr.mxu0 0.0
    %1775 = vmatpush1.msra.mxu0 0.0
    %1776 = vmatprep.subr.mxu0 0.0
    %1777 = vmatpush1.msra.mxu0 0.0
    %1778 = vmatprep.subr.mxu0 0.0
    %1779 = vmatpush1.msra.mxu0 0.0
    %1780 = vmatprep.subr.mxu0 0.0
    %1781 = vmatpush1.msra.mxu0 0.0
    %1782 = vmatprep.mubr.f32.mxu0 0.0
    %1783 = vmatmul.mubr.f32.gmra.mrb[0].mxu0 %v1713
    %v1784 = vpop.f32.mrb[0].mxu0
    %v1785 = vadd.f32 %v1711, %v1784
    %v1786 = vpop.f32.mrb[0].mxu0
    %1787 = vmatprep.mubr.f32.mxu0 0.0
    %1788 = vmatmul.mubr.f32.gmra.mrb[0].mxu0 %v1716
    %v1789 = vpop.f32.mrb[0].mxu0
    %v1790 = vadd.f32 %v1711, %v1789
    %v1791 = vpop.f32.mrb[0].mxu0
    %1792 = vdwg.mxu0
    %v1793 = vmax.f32 %v1785, 0.0
    %v1794 = vmax.f32 %v1790, 0.0
    %1795 = vmatprep.subr.mxu0 0.0
    %1796 = vmatpush1.msra.mxu0 %v53
    %1797 = vmatprep.subr.mxu0 0.0
    %1798 = vmatpush1.msra.mxu0 %v54
    %1799 = vmatprep.subr.mxu0 0.0
    %1800 = vmatpush1.msra.mxu0 %v55
    %1801 = vmatprep.subr.mxu0 0.0
    %1802 = vmatpush1.msra.mxu0 %v56
    %1803 = vmatprep.subr.mxu0 0.0
    %1804 = vmatpush1.msra.mxu0 %v57
    %1805 = vmatprep.subr.mxu0 0.0
    %1806 = vmatpush1.msra.mxu0 %v58
    %1807 = vmatprep.subr.mxu0 0.0
    %1808 = vmatpush1.msra.mxu0 %v59
    %1809 = vmatprep.subr.mxu0 0.0
    %1810 = vmatpush1.msra.mxu0 %v60
    %1811 = vmatprep.subr.mxu0 0.0
    %1812 = vmatpush1.msra.mxu0 %v61
    %1813 = vmatprep.subr.mxu0 0.0
    %1814 = vmatpush1.msra.mxu0 %v62
    %1815 = vmatprep.subr.mxu0 0.0
    %1816 = vmatpush1.msra.mxu0 %v63
    %1817 = vmatprep.subr.mxu0 0.0
    %1818 = vmatpush1.msra.mxu0 %v64
    %1819 = vmatprep.subr.mxu0 0.0
    %1820 = vmatpush1.msra.mxu0 %v65
    %1821 = vmatprep.subr.mxu0 0.0
    %1822 = vmatpush1.msra.mxu0 %v66
    %1823 = vmatprep.subr.mxu0 0.0
    %1824 = vmatpush1.msra.mxu0 %v67
    %1825 = vmatprep.subr.mxu0 0.0
    %1826 = vmatpush1.msra.mxu0 %v68
    %1827 = vmatprep.subr.mxu0 0.0
    %1828 = vmatpush1.msra.mxu0 0.0
    %1829 = vmatprep.subr.mxu0 0.0
    %1830 = vmatpush1.msra.mxu0 0.0
    %1831 = vmatprep.subr.mxu0 0.0
    %1832 = vmatpush1.msra.mxu0 0.0
    %1833 = vmatprep.subr.mxu0 0.0
    %1834 = vmatpush1.msra.mxu0 0.0
    %1835 = vmatprep.subr.mxu0 0.0
    %1836 = vmatpush1.msra.mxu0 0.0
    %1837 = vmatprep.subr.mxu0 0.0
    %1838 = vmatpush1.msra.mxu0 0.0
    %1839 = vmatprep.subr.mxu0 0.0
    %1840 = vmatpush1.msra.mxu0 0.0
    %1841 = vmatprep.subr.mxu0 0.0
    %1842 = vmatpush1.msra.mxu0 0.0
    %1843 = vmatprep.subr.mxu0 0.0
    %1844 = vmatpush1.msra.mxu0 0.0
    %1845 = vmatprep.subr.mxu0 0.0
    %1846 = vmatpush1.msra.mxu0 0.0
    %1847 = vmatprep.subr.mxu0 0.0
    %1848 = vmatpush1.msra.mxu0 0.0
    %1849 = vmatprep.subr.mxu0 0.0
    %1850 = vmatpush1.msra.mxu0 0.0
    %1851 = vmatprep.subr.mxu0 0.0
    %1852 = vmatpush1.msra.mxu0 0.0
    %1853 = vmatprep.subr.mxu0 0.0
    %1854 = vmatpush1.msra.mxu0 0.0
    %1855 = vmatprep.subr.mxu0 0.0
    %1856 = vmatpush1.msra.mxu0 0.0
    %1857 = vmatprep.subr.mxu0 0.0
    %1858 = vmatpush1.msra.mxu0 0.0
    %1859 = vmatprep.mubr.f32.mxu0 0.0
    %1860 = vmatmul.mubr.f32.gmra.mrb[0].mxu0 %v1793
    %v1861 = vpop.f32.mrb[0].mxu0
    %v1862 = vadd.f32 0.0, %v1861
    %v1863 = vpop.f32.mrb[0].mxu0
    %1864 = vmatprep.mubr.f32.mxu0 0.0
    %1865 = vmatmul.mubr.f32.gmra.mrb[0].mxu0 %v1794
    %v1866 = vpop.f32.mrb[0].mxu0
    %v1867 = vadd.f32 0.0, %v1866
    %v1868 = vpop.f32.mrb[0].mxu0
    %1869 = vdwg.mxu0
    %v1870 = vlaneseq
    %v1871 = vshrl.u32 %v1870, 7
    %v1872 = vsub.s32 0, %v1871
    %v1873 = vrot.slane %v78, %v1872
    %v1874 = vadd.f32 %v1862, %v1873
    %v1875 = vadd.f32 %v1867, %v1873
    %v1876 = vadd.f32 %v1668, %v1874
    %v1877 = vadd.f32 %v1669, %v1875
    %v1878 = vlaneseq
    %v1879 = vshrl.u32 %v1878, 7
    %v1880 = vsub.s32 0, %v1879
    %v1881 = vrot.slane %v79, %v1880
    %v1883 = vsel %vm175, %v1876, 0
    %v1886 = vsel %vm175, %v1877, 0
    %1888 = vmatprep.subr.mxu0 0.0
    %1889 = vmatpush1.msra.mxu0 %v69
    %1890 = vmatprep.subr.mxu0 0.0
    %1891 = vmatpush1.msra.mxu0 %v70
    %1892 = vmatprep.subr.mxu0 0.0
    %1893 = vmatpush1.msra.mxu0 %v71
    %1894 = vmatprep.subr.mxu0 0.0
    %1895 = vmatpush1.msra.mxu0 %v72
    %1896 = vmatprep.subr.mxu0 0.0
    %1897 = vmatpush1.msra.mxu0 0.0
    %1898 = vmatprep.subr.mxu0 0.0
    %1899 = vmatpush1.msra.mxu0 0.0
    %1900 = vmatprep.subr.mxu0 0.0
    %1901 = vmatpush1.msra.mxu0 0.0
    %1902 = vmatprep.subr.mxu0 0.0
    %1903 = vmatpush1.msra.mxu0 0.0
    %1904 = vmatprep.subr.mxu0 0.0
    %1905 = vmatpush1.msra.mxu0 0.0
    %1906 = vmatprep.subr.mxu0 0.0
    %1907 = vmatpush1.msra.mxu0 0.0
    %1908 = vmatprep.subr.mxu0 0.0
    %1909 = vmatpush1.msra.mxu0 0.0
    %1910 = vmatprep.subr.mxu0 0.0
    %1911 = vmatpush1.msra.mxu0 0.0
    %1912 = vmatprep.subr.mxu0 0.0
    %1913 = vmatpush1.msra.mxu0 0.0
    %1914 = vmatprep.subr.mxu0 0.0
    %1915 = vmatpush1.msra.mxu0 0.0
    %1916 = vmatprep.subr.mxu0 0.0
    %1917 = vmatpush1.msra.mxu0 0.0
    %1918 = vmatprep.subr.mxu0 0.0
    %1919 = vmatpush1.msra.mxu0 0.0
    %1920 = vmatprep.subr.mxu0 0.0
    %1921 = vmatpush1.msra.mxu0 0.0
    %1922 = vmatprep.subr.mxu0 0.0
    %1923 = vmatpush1.msra.mxu0 0.0
    %1924 = vmatprep.subr.mxu0 0.0
    %1925 = vmatpush1.msra.mxu0 0.0
    %1926 = vmatprep.subr.mxu0 0.0
    %1927 = vmatpush1.msra.mxu0 0.0
    %1928 = vmatprep.subr.mxu0 0.0
    %1929 = vmatpush1.msra.mxu0 0.0
    %1930 = vmatprep.subr.mxu0 0.0
    %1931 = vmatpush1.msra.mxu0 0.0
    %1932 = vmatprep.subr.mxu0 0.0
    %1933 = vmatpush1.msra.mxu0 0.0
    %1934 = vmatprep.subr.mxu0 0.0
    %1935 = vmatpush1.msra.mxu0 0.0
    %1936 = vmatprep.subr.mxu0 0.0
    %1937 = vmatpush1.msra.mxu0 0.0
    %1938 = vmatprep.subr.mxu0 0.0
    %1939 = vmatpush1.msra.mxu0 0.0
    %1940 = vmatprep.subr.mxu0 0.0
    %1941 = vmatpush1.msra.mxu0 0.0
    %1942 = vmatprep.subr.mxu0 0.0
    %1943 = vmatpush1.msra.mxu0 0.0
    %1944 = vmatprep.subr.mxu0 0.0
    %1945 = vmatpush1.msra.mxu0 0.0
    %1946 = vmatprep.subr.mxu0 0.0
    %1947 = vmatpush1.msra.mxu0 0.0
    %1948 = vmatprep.subr.mxu0 0.0
    %1949 = vmatpush1.msra.mxu0 0.0
    %1950 = vmatprep.subr.mxu0 0.0
    %1951 = vmatpush1.msra.mxu0 0.0
    %1952 = vmatprep.mubr.f32.mxu0 0.0
    %1953 = vmatmul.mubr.f32.gmra.mrb[0].mxu0 %v1883
    %v1954 = vpop.f32.mrb[0].mxu0
    %v1955 = vadd.f32 %v1881, %v1954
    %v1956 = vpop.f32.mrb[0].mxu0
    %1957 = vmatprep.mubr.f32.mxu0 0.0
    %1958 = vmatmul.mubr.f32.gmra.mrb[0].mxu0 %v1886
    %v1959 = vpop.f32.mrb[0].mxu0
    %v1960 = vadd.f32 %v1881, %v1959
    %v1961 = vpop.f32.mrb[0].mxu0
    %1962 = vdwg.mxu0
    %1963 = vst [vmem:[#allocation5] sm:$0xff] %v1955
    %1964 = vst [vmem:[#allocation5 + $0x8] sm:$0xff] %v1960
    // Predicated region
    $region18: #{tpu_custom_call.1} parent=1 // pred_check
      _
    $region19: #{tpu_custom_call.1} parent=1 // pred_check_branch
      %1966 = sbr.rel (0) target = $region21
    $region20: #{tpu_custom_call.1} parent=1 // pred_region
      %s1968 = ssub.s32 256, 256
      %1969 = vsyncadd [#allocation4], %s1968
      %s1970 = sshll.u32 [#allocation5], 4
      %s1971 = int_to_ptr.vmem [resolvable:$true] %s1970
      %1976 = dma.vmem_to_hbm [thread:$0]  %s1971, 256, %s3, [#allocation4], 128, 128, 8
    $region21: #{tpu_custom_call.1} parent=1 // pred_fallthru
      _
    // Predicated region
    $region22: #{tpu_custom_call.1} parent=1 // pred_check
      _
    $region23: #{tpu_custom_call.1} parent=1 // pred_check_branch
      %1978 = sbr.rel (0) target = $region25
    $region24: #{tpu_custom_call.1} parent=1 // pred_region
      %1979 = dma.done [#allocation4], 256
    $region25: #{tpu_custom_call.1} parent=1 // pred_fallthru
      _
    %1980 = vsyncpa [#allocation3], 1
    %1981 = vsyncpa [#allocation4], 1

</llo_original>
